<compile_context>
chip_gen: v5e
topology: v5e:2x2
jax: 0.10.0
libtpu: 0.0.40
codegen_flags: <defaults>
</compile_context>

<pallas_src>
import jax
import jax.numpy as jnp
from jax.experimental import pallas as pl
from jax.experimental.pallas import tpu as pltpu  # noqa: F401  (kept for prod-size plan)

# ----- small synthetic config -----
BATCH = 2
SEQ = 8
HIDDEN = 32
NUM_HEADS = 4
HEAD_DIM = HIDDEN // NUM_HEADS
INTERMEDIATE = 64
NUM_EXPERTS = 2
RMS_EPS = 1e-6
ROPE_THETA = 10000.0

ROWS = BATCH * SEQ                           # batch folded into the sublane axis
QKV_COLS = 5 * HIDDEN                        # q | k | v | rot_half(q) | rot_half(k)
GU_COLS = 2 * NUM_EXPERTS * INTERMEDIATE     # gate(e0)|gate(e1)|up(e0)|up(e1) = 256
DOWN_ROWS = NUM_EXPERTS * INTERMEDIATE       # stacked down-proj contraction = 128


def decoder_layer_kernel(x_ref, cos_ref, sin_ref, bias_ref, sel_ref,
                         wqkv_ref, wo_ref, wrt_ref, wgu_ref, wd_ref,
                         out_ref, router_ref):
    f32 = jnp.float32
    bf16 = jnp.bfloat16

    x = x_ref[...]                                   # (ROWS, H) f32 (batch folded in)

    # ---------- input RMSNorm (f32; ln weight already folded into wqkv) ----------
    h = x * jax.lax.rsqrt(jnp.mean(x * x, axis=-1, keepdims=True) + RMS_EPS)

    # ---------- fused QKV (+ pre-rotated q/k) projection: one bf16 MXU op ----------
    proj = jnp.dot(h.astype(bf16), wqkv_ref[...], preferred_element_type=f32)  # (ROWS,5H)

    q = proj[:, 0 * HIDDEN:1 * HIDDEN]
    k = proj[:, 1 * HIDDEN:2 * HIDDEN]
    v = proj[:, 2 * HIDDEN:3 * HIDDEN]
    qr = proj[:, 3 * HIDDEN:4 * HIDDEN]              # rotate_half(q) via permuted weights
    kr = proj[:, 4 * HIDDEN:5 * HIDDEN]              # rotate_half(k)

    # ---------- RoPE on the 2-D (ROWS, H) layout: full-width VPU FMAs ----------
    cos = cos_ref[...]
    sin = sin_ref[...]
    q = q * cos + qr * sin
    k = k * cos + kr * sin

    # ---------- head-batched causal attention ----------
    def to_heads(t):  # (ROWS, H) -> (NH, ROWS, D): one reshape + one transpose
        return jnp.transpose(t.reshape(ROWS, NUM_HEADS, HEAD_DIM), (1, 0, 2))

    q3 = to_heads(q).astype(bf16)
    k3 = to_heads(k).astype(bf16)
    v3 = to_heads(v).astype(bf16)

    sc = jnp.einsum('hqd,hkd->hqk', q3, k3, preferred_element_type=f32)  # (NH,ROWS,ROWS)
    sc = sc + bias_ref[...][None, :, :]              # block-diag causal bias (host-built)
    sc = sc - jnp.max(sc, axis=-1, keepdims=True)
    p = jnp.exp(sc)
    p = p * pl.reciprocal(jnp.sum(p, axis=-1, keepdims=True), approx=True)

    ctx = jnp.einsum('hqk,hkd->hqd', p.astype(bf16), v3,
                     preferred_element_type=f32)                          # (NH,ROWS,D)
    # fuse heads: (NH,ROWS,D) -> (ROWS, NH*D) and ONE K=32 matmul against Wo
    ctx2 = jnp.transpose(ctx, (1, 0, 2)).reshape(ROWS, HIDDEN)
    attn_out = jnp.dot(ctx2.astype(bf16), wo_ref[...],
                       preferred_element_type=f32)                        # (ROWS, H)

    h1 = x + attn_out                                # residual add

    # ---------- post-attention RMSNorm (ln weight folded into wrt / wgu) ----------
    h2 = h1 * jax.lax.rsqrt(jnp.mean(h1 * h1, axis=-1, keepdims=True) + RMS_EPS)

    # ---------- router (E=2): true-f32 VPU dot products, exact softmax ----------
    wrt = wrt_ref[...]                               # (E, H) f32
    rl = jnp.concatenate(
        [jnp.sum(h2 * wrt[e:e + 1, :], axis=-1, keepdims=True)
         for e in range(NUM_EXPERTS)], axis=-1)       # (ROWS, E) pre-softmax logits
    re = jnp.exp(rl - jnp.max(rl, axis=-1, keepdims=True))
    rw = re / jnp.sum(re, axis=-1, keepdims=True)     # exact reciprocal for routing

    # ---------- fused MoE SwiGLU (both experts in wide matmuls) ----------
    gu = jnp.dot(h2.astype(bf16), wgu_ref[...], preferred_element_type=f32)  # (ROWS,4I)
    gate = gu[:, :DOWN_ROWS]
    up = gu[:, DOWN_ROWS:]
    act = gate * jax.lax.logistic(gate) * up                                 # (ROWS,2I) f32

    # per-column routing weight via host-built (1, 2I) 0/1 selector
    sel = sel_ref[...]
    escale = rw[:, 0:1] * sel + rw[:, 1:2] * (1.0 - sel)
    act = act * escale

    # one stacked (ROWS,128)@(128,H) down projection == weighted expert sum
    mlp_out = jnp.dot(act.astype(bf16), wd_ref[...], preferred_element_type=f32)

    out_ref[...] = h1 + mlp_out                      # residual add
    router_ref[...] = rl                             # pre-softmax logits (HF convention)


def _rotate_half_cols(w):
    """rotate_half applied to the per-head output (column) axis of a (H, H) proj."""
    half = HEAD_DIM // 2
    w3 = w.reshape(HIDDEN, NUM_HEADS, HEAD_DIM)
    return jnp.concatenate([-w3[..., half:], w3[..., :half]], axis=-1).reshape(
        HIDDEN, HIDDEN)


def _prepare_inputs(params, cos, sin):
    """Host-side exact reparameterization: fused/folded weights, masks, bf16 casts."""
    f32 = jnp.float32
    bf16 = jnp.bfloat16
    scale = 1.0 / jnp.sqrt(jnp.asarray(HEAD_DIM, f32))
    ln1 = params["ln1_w"][:, None]
    ln2 = params["ln2_w"][:, None]

    wq = params["wq"] * scale                        # fold 1/sqrt(d) into Wq (linear)
    wk = params["wk"]
    wv = params["wv"]
    wqkv = ln1 * jnp.concatenate(
        [wq, wk, wv, _rotate_half_cols(wq), _rotate_half_cols(wk)], axis=1)  # (H, 5H)
    wo = params["wo"]                                                        # (H, H)

    wrt = (ln2 * params["wr"]).T                                             # (E, H) f32
    wg, wu, wd = params["wg"], params["wu"], params["wd"]
    wgu = ln2 * jnp.concatenate([wg[0], wg[1], wu[0], wu[1]], axis=1)        # (H, 4I)
    wd_cat = jnp.concatenate([wd[0], wd[1]], axis=0)                         # (2I, H)

    # RoPE tables tiled per head then per batch -> (ROWS, H)
    cos_bs = jnp.tile(jnp.tile(cos, (1, NUM_HEADS)), (BATCH, 1)).astype(f32)
    sin_bs = jnp.tile(jnp.tile(sin, (1, NUM_HEADS)), (BATCH, 1)).astype(f32)

    # block-diagonal (per batch) causal additive bias, built on the host
    qi = jnp.arange(ROWS, dtype=jnp.int32)[:, None]
    ki = jnp.arange(ROWS, dtype=jnp.int32)[None, :]
    keep = (ki <= qi) & ((qi // SEQ) == (ki // SEQ))
    bias = jnp.where(keep, 0.0, -1e30).astype(f32)                           # (ROWS, ROWS)

    # expert-column selector: 1.0 for expert-0 columns, 0.0 for expert-1 columns
    sel = (jnp.arange(DOWN_ROWS, dtype=jnp.int32)[None, :] < INTERMEDIATE).astype(f32)

    return (cos_bs, sin_bs, bias, sel, wqkv.astype(bf16), wo.astype(bf16),
            wrt.astype(f32), wgu.astype(bf16), wd_cat.astype(bf16))


@jax.jit
def aura_decoder_layer(x, cos, sin, params):
    B, S, H = x.shape
    (cos_bs, sin_bs, bias, sel, wqkv, wo, wrt, wgu, wd_cat) = _prepare_inputs(
        params, cos, sin)

    x2 = x.reshape(B * S, H)                         # fold batch into sublane rows

    # No grid: a single kernel invocation with everything VMEM-resident (tiny
    # shapes).  TODO(synk): at production sizes switch to a K-tiled grid with an
    # f32 VMEM accumulator, single-buffered weight specs and vmem_limit_bytes.
    out2, rl2 = pl.pallas_call(
        decoder_layer_kernel,
        out_shape=[
            jax.ShapeDtypeStruct((B * S, H), jnp.float32),
            jax.ShapeDtypeStruct((B * S, NUM_EXPERTS), jnp.float32),
        ],
    )(x2, cos_bs, sin_bs, bias, sel, wqkv, wo, wrt, wgu, wd_cat)

    return out2.reshape(B, S, H), rl2.reshape(B, S, NUM_EXPERTS)


def make_rope(seq_len, head_dim, theta=ROPE_THETA):
    inv_freq = 1.0 / (theta ** (jnp.arange(0, head_dim, 2, dtype=jnp.float32) / head_dim))
    pos = jnp.arange(seq_len, dtype=jnp.float32)
    freqs = pos[:, None] * inv_freq[None, :]
    emb = jnp.concatenate([freqs, freqs], axis=-1)   # (S, head_dim)
    return jnp.cos(emb), jnp.sin(emb)


def init_params(key):
    ks = jax.random.split(key, 8)
    scale = 0.05
    return {
        "ln1_w": jnp.ones((HIDDEN,), jnp.float32),
        "ln2_w": jnp.ones((HIDDEN,), jnp.float32),
        "wq": scale * jax.random.normal(ks[0], (HIDDEN, HIDDEN), jnp.float32),
        "wk": scale * jax.random.normal(ks[1], (HIDDEN, HIDDEN), jnp.float32),
        "wv": scale * jax.random.normal(ks[2], (HIDDEN, HIDDEN), jnp.float32),
        "wo": scale * jax.random.normal(ks[3], (HIDDEN, HIDDEN), jnp.float32),
        "wr": scale * jax.random.normal(ks[4], (HIDDEN, NUM_EXPERTS), jnp.float32),
        "wg": scale * jax.random.normal(ks[5], (NUM_EXPERTS, HIDDEN, INTERMEDIATE), jnp.float32),
        "wu": scale * jax.random.normal(ks[6], (NUM_EXPERTS, HIDDEN, INTERMEDIATE), jnp.float32),
        "wd": scale * jax.random.normal(ks[7], (NUM_EXPERTS, INTERMEDIATE, HIDDEN), jnp.float32),
    }


if __name__ == "__main__":
    key = jax.random.PRNGKey(0)
    k_x, k_p = jax.random.split(key)
    x = jax.random.normal(k_x, (BATCH, SEQ, HIDDEN), jnp.float32)
    params = init_params(k_p)
    cos, sin = make_rope(SEQ, HEAD_DIM)

    hidden_out, router_logits = aura_decoder_layer(x, cos, sin, params)
    jax.block_until_ready(hidden_out)
    jax.block_until_ready(router_logits)

    assert hidden_out.shape == (BATCH, SEQ, HIDDEN)
    assert router_logits.shape == (BATCH, SEQ, NUM_EXPERTS)
    assert bool(jnp.all(jnp.isfinite(hidden_out)))
    assert bool(jnp.all(jnp.isfinite(router_logits)))
    print("KERNEL_OK")
</pallas_src>

<mosaic_0001>
module attributes {stable_mosaic.version = 11 : i64} {
  func.func @decoder_layer_kernel(%arg0: memref<16x32xf32, #tpu.memory_space<vmem>>, %arg1: memref<16x32xf32, #tpu.memory_space<vmem>>, %arg2: memref<16x32xf32, #tpu.memory_space<vmem>>, %arg3: memref<16x16xf32, #tpu.memory_space<vmem>>, %arg4: memref<1x128xf32, #tpu.memory_space<vmem>>, %arg5: memref<32x160xbf16, #tpu.memory_space<vmem>>, %arg6: memref<32x32xbf16, #tpu.memory_space<vmem>>, %arg7: memref<2x32xf32, #tpu.memory_space<vmem>>, %arg8: memref<32x256xbf16, #tpu.memory_space<vmem>>, %arg9: memref<128x32xbf16, #tpu.memory_space<vmem>>, %arg10: memref<16x32xf32, #tpu.memory_space<vmem>>, %arg11: memref<16x2xf32, #tpu.memory_space<vmem>>) attributes {dimension_semantics = [], scalar_prefetch = 0 : i64, scratch_operands = 0 : i64, tpu.core_type = #tpu.core_type<tc>} {
    %c0 = arith.constant 0 : index
    %c0_0 = arith.constant 0 : index
    %0 = vector.load %arg0[%c0, %c0_0] : memref<16x32xf32, #tpu.memory_space<vmem>>, vector<16x32xf32>
    %1 = arith.mulf %0, %0 : vector<16x32xf32>
    %cst = arith.constant dense<0.000000e+00> : vector<16xf32>
    %2 = vector.multi_reduction <add>, %1, %cst [1] : vector<16x32xf32> to vector<16xf32>
    %3 = vector.shape_cast %2 : vector<16xf32> to vector<16x1xf32>
    %cst_1 = arith.constant 3.200000e+01 : f32
    %4 = vector.broadcast %cst_1 : f32 to vector<16x1xf32>
    %5 = arith.divf %3, %4 : vector<16x1xf32>
    %cst_2 = arith.constant 9.99999997E-7 : f32
    %6 = vector.broadcast %cst_2 : f32 to vector<16x1xf32>
    %7 = arith.addf %5, %6 : vector<16x1xf32>
    %8 = math.rsqrt %7 : vector<16x1xf32>
    %9 = vector.broadcast %8 : vector<16x1xf32> to vector<16x32xf32>
    %10 = arith.mulf %0, %9 : vector<16x32xf32>
    %11 = arith.truncf %10 : vector<16x32xf32> to vector<16x32xbf16>
    %c0_3 = arith.constant 0 : index
    %c0_4 = arith.constant 0 : index
    %12 = vector.load %arg5[%c0_3, %c0_4] : memref<32x160xbf16, #tpu.memory_space<vmem>>, vector<32x160xbf16>
    %cst_5 = arith.constant dense<0.000000e+00> : vector<16x160xf32>
    %13 = tpu.matmul %11, %12, %cst_5 {dimension_numbers = #tpu.dot_dimension_numbers<[1], [0], [0], [1], [0, 0, 1, 1], [], []>} : vector<16x32xbf16>, vector<32x160xbf16>, vector<16x160xf32> -> vector<16x160xf32>
    %14 = vector.extract_strided_slice %13 {offsets = [0, 0], sizes = [16, 32], strides = [1, 1]} : vector<16x160xf32> to vector<16x32xf32>
    %15 = vector.extract_strided_slice %13 {offsets = [0, 32], sizes = [16, 32], strides = [1, 1]} : vector<16x160xf32> to vector<16x32xf32>
    %16 = vector.extract_strided_slice %13 {offsets = [0, 64], sizes = [16, 32], strides = [1, 1]} : vector<16x160xf32> to vector<16x32xf32>
    %17 = vector.extract_strided_slice %13 {offsets = [0, 96], sizes = [16, 32], strides = [1, 1]} : vector<16x160xf32> to vector<16x32xf32>
    %18 = vector.extract_strided_slice %13 {offsets = [0, 128], sizes = [16, 32], strides = [1, 1]} : vector<16x160xf32> to vector<16x32xf32>
    %c0_6 = arith.constant 0 : index
    %c0_7 = arith.constant 0 : index
    %19 = vector.load %arg1[%c0_6, %c0_7] : memref<16x32xf32, #tpu.memory_space<vmem>>, vector<16x32xf32>
    %c0_8 = arith.constant 0 : index
    %c0_9 = arith.constant 0 : index
    %20 = vector.load %arg2[%c0_8, %c0_9] : memref<16x32xf32, #tpu.memory_space<vmem>>, vector<16x32xf32>
    %21 = arith.mulf %14, %19 : vector<16x32xf32>
    %22 = arith.mulf %17, %20 : vector<16x32xf32>
    %23 = arith.addf %21, %22 : vector<16x32xf32>
    %24 = arith.mulf %15, %19 : vector<16x32xf32>
    %25 = arith.mulf %18, %20 : vector<16x32xf32>
    %26 = arith.addf %24, %25 : vector<16x32xf32>
    %27 = vector.shape_cast %23 : vector<16x32xf32> to vector<16x4x8xf32>
    %28 = tpu.transpose %27, [1, 0, 2] : vector<16x4x8xf32> -> vector<4x16x8xf32>
    %29 = arith.truncf %28 : vector<4x16x8xf32> to vector<4x16x8xbf16>
    %30 = vector.shape_cast %26 : vector<16x32xf32> to vector<16x4x8xf32>
    %31 = tpu.transpose %30, [1, 0, 2] : vector<16x4x8xf32> -> vector<4x16x8xf32>
    %32 = arith.truncf %31 : vector<4x16x8xf32> to vector<4x16x8xbf16>
    %33 = vector.shape_cast %16 : vector<16x32xf32> to vector<16x4x8xf32>
    %34 = tpu.transpose %33, [1, 0, 2] : vector<16x4x8xf32> -> vector<4x16x8xf32>
    %35 = arith.truncf %34 : vector<4x16x8xf32> to vector<4x16x8xbf16>
    "tpu.trace_start"() <{level = 10 : i32, message = "hqd,hkd->hqk"}> : () -> ()
    %cst_10 = arith.constant dense<0.000000e+00> : vector<4x16x16xf32>
    %36 = tpu.matmul %29, %32, %cst_10 {dimension_numbers = #tpu.dot_dimension_numbers<[2], [2], [1], [1], [0, 0, 0, 1, 1, 1], [0], [0]>} : vector<4x16x8xbf16>, vector<4x16x8xbf16>, vector<4x16x16xf32> -> vector<4x16x16xf32>
    "tpu.trace_stop"() : () -> ()
    %c0_11 = arith.constant 0 : index
    %c0_12 = arith.constant 0 : index
    %37 = vector.load %arg3[%c0_11, %c0_12] : memref<16x16xf32, #tpu.memory_space<vmem>>, vector<16x16xf32>
    %38 = vector.shape_cast %37 : vector<16x16xf32> to vector<1x16x16xf32>
    %39 = vector.broadcast %38 : vector<1x16x16xf32> to vector<4x16x16xf32>
    %40 = arith.addf %36, %39 : vector<4x16x16xf32>
    %cst_13 = arith.constant dense<0xFF800000> : vector<4x16xf32>
    %41 = vector.multi_reduction <maximumf>, %40, %cst_13 [2] : vector<4x16x16xf32> to vector<4x16xf32>
    %42 = vector.shape_cast %41 : vector<4x16xf32> to vector<4x16x1xf32>
    %43 = vector.broadcast %42 : vector<4x16x1xf32> to vector<4x16x16xf32>
    %44 = arith.subf %40, %43 : vector<4x16x16xf32>
    %45 = math.exp %44 : vector<4x16x16xf32>
    %cst_14 = arith.constant dense<0.000000e+00> : vector<4x16xf32>
    %46 = vector.multi_reduction <add>, %45, %cst_14 [2] : vector<4x16x16xf32> to vector<4x16xf32>
    %47 = vector.shape_cast %46 : vector<4x16xf32> to vector<4x16x1xf32>
    %48 = tpu.reciprocal %47 {approx = true} : vector<4x16x1xf32> -> vector<4x16x1xf32>
    %49 = vector.broadcast %48 : vector<4x16x1xf32> to vector<4x16x16xf32>
    %50 = arith.mulf %45, %49 : vector<4x16x16xf32>
    %51 = arith.truncf %50 : vector<4x16x16xf32> to vector<4x16x16xbf16>
    "tpu.trace_start"() <{level = 10 : i32, message = "hqk,hkd->hqd"}> : () -> ()
    %cst_15 = arith.constant dense<0.000000e+00> : vector<4x16x8xf32>
    %52 = tpu.matmul %51, %35, %cst_15 {dimension_numbers = #tpu.dot_dimension_numbers<[2], [1], [1], [2], [0, 0, 0, 1, 1, 2], [0], [0]>} : vector<4x16x16xbf16>, vector<4x16x8xbf16>, vector<4x16x8xf32> -> vector<4x16x8xf32>
    "tpu.trace_stop"() : () -> ()
    %53 = tpu.transpose %52, [1, 0, 2] : vector<4x16x8xf32> -> vector<16x4x8xf32>
    %54 = vector.shape_cast %53 : vector<16x4x8xf32> to vector<16x32xf32>
    %55 = arith.truncf %54 : vector<16x32xf32> to vector<16x32xbf16>
    %c0_16 = arith.constant 0 : index
    %c0_17 = arith.constant 0 : index
    %56 = vector.load %arg6[%c0_16, %c0_17] : memref<32x32xbf16, #tpu.memory_space<vmem>>, vector<32x32xbf16>
    %cst_18 = arith.constant dense<0.000000e+00> : vector<16x32xf32>
    %57 = tpu.matmul %55, %56, %cst_18 {dimension_numbers = #tpu.dot_dimension_numbers<[1], [0], [0], [1], [0, 0, 1, 1], [], []>} : vector<16x32xbf16>, vector<32x32xbf16>, vector<16x32xf32> -> vector<16x32xf32>
    %58 = arith.addf %0, %57 : vector<16x32xf32>
    %59 = arith.mulf %58, %58 : vector<16x32xf32>
    %cst_19 = arith.constant dense<0.000000e+00> : vector<16xf32>
    %60 = vector.multi_reduction <add>, %59, %cst_19 [1] : vector<16x32xf32> to vector<16xf32>
    %61 = vector.shape_cast %60 : vector<16xf32> to vector<16x1xf32>
    %cst_20 = arith.constant 3.200000e+01 : f32
    %62 = vector.broadcast %cst_20 : f32 to vector<16x1xf32>
    %63 = arith.divf %61, %62 : vector<16x1xf32>
    %cst_21 = arith.constant 9.99999997E-7 : f32
    %64 = vector.broadcast %cst_21 : f32 to vector<16x1xf32>
    %65 = arith.addf %63, %64 : vector<16x1xf32>
    %66 = math.rsqrt %65 : vector<16x1xf32>
    %67 = vector.broadcast %66 : vector<16x1xf32> to vector<16x32xf32>
    %68 = arith.mulf %58, %67 : vector<16x32xf32>
    %c0_22 = arith.constant 0 : index
    %c0_23 = arith.constant 0 : index
    %69 = vector.load %arg7[%c0_22, %c0_23] : memref<2x32xf32, #tpu.memory_space<vmem>>, vector<2x32xf32>
    %70 = vector.extract_strided_slice %69 {offsets = [0, 0], sizes = [1, 32], strides = [1, 1]} : vector<2x32xf32> to vector<1x32xf32>
    %71 = vector.broadcast %70 : vector<1x32xf32> to vector<16x32xf32>
    %72 = arith.mulf %68, %71 : vector<16x32xf32>
    %cst_24 = arith.constant dense<0.000000e+00> : vector<16xf32>
    %73 = vector.multi_reduction <add>, %72, %cst_24 [1] : vector<16x32xf32> to vector<16xf32>
    %74 = vector.shape_cast %73 : vector<16xf32> to vector<16x1xf32>
    %75 = vector.extract_strided_slice %69 {offsets = [1, 0], sizes = [1, 32], strides = [1, 1]} : vector<2x32xf32> to vector<1x32xf32>
    %76 = vector.broadcast %75 : vector<1x32xf32> to vector<16x32xf32>
    %77 = arith.mulf %68, %76 : vector<16x32xf32>
    %cst_25 = arith.constant dense<0.000000e+00> : vector<16xf32>
    %78 = vector.multi_reduction <add>, %77, %cst_25 [1] : vector<16x32xf32> to vector<16xf32>
    %79 = vector.shape_cast %78 : vector<16xf32> to vector<16x1xf32>
    %80 = tpu.concatenate %74, %79 in 1 : vector<16x1xf32>, vector<16x1xf32> -> vector<16x2xf32>
    %cst_26 = arith.constant dense<0xFF800000> : vector<16xf32>
    %81 = vector.multi_reduction <maximumf>, %80, %cst_26 [1] : vector<16x2xf32> to vector<16xf32>
    %82 = vector.shape_cast %81 : vector<16xf32> to vector<16x1xf32>
    %83 = vector.broadcast %82 : vector<16x1xf32> to vector<16x2xf32>
    %84 = arith.subf %80, %83 : vector<16x2xf32>
    %85 = math.exp %84 : vector<16x2xf32>
    %cst_27 = arith.constant dense<0.000000e+00> : vector<16xf32>
    %86 = vector.multi_reduction <add>, %85, %cst_27 [1] : vector<16x2xf32> to vector<16xf32>
    %87 = vector.shape_cast %86 : vector<16xf32> to vector<16x1xf32>
    %88 = vector.broadcast %87 : vector<16x1xf32> to vector<16x2xf32>
    %89 = arith.divf %85, %88 : vector<16x2xf32>
    %90 = arith.truncf %68 : vector<16x32xf32> to vector<16x32xbf16>
    %c0_28 = arith.constant 0 : index
    %c0_29 = arith.constant 0 : index
    %91 = vector.load %arg8[%c0_28, %c0_29] : memref<32x256xbf16, #tpu.memory_space<vmem>>, vector<32x256xbf16>
    %cst_30 = arith.constant dense<0.000000e+00> : vector<16x256xf32>
    %92 = tpu.matmul %90, %91, %cst_30 {dimension_numbers = #tpu.dot_dimension_numbers<[1], [0], [0], [1], [0, 0, 1, 1], [], []>} : vector<16x32xbf16>, vector<32x256xbf16>, vector<16x256xf32> -> vector<16x256xf32>
    %93 = vector.extract_strided_slice %92 {offsets = [0, 0], sizes = [16, 128], strides = [1, 1]} : vector<16x256xf32> to vector<16x128xf32>
    %94 = vector.extract_strided_slice %92 {offsets = [0, 128], sizes = [16, 128], strides = [1, 1]} : vector<16x256xf32> to vector<16x128xf32>
    %95 = arith.negf %93 : vector<16x128xf32>
    %96 = math.exp %95 : vector<16x128xf32>
    %cst_31 = arith.constant 1.000000e+00 : f32
    %97 = vector.broadcast %cst_31 : f32 to vector<16x128xf32>
    %98 = arith.addf %97, %96 : vector<16x128xf32>
    %99 = arith.divf %97, %98 : vector<16x128xf32>
    %100 = arith.mulf %93, %99 : vector<16x128xf32>
    %101 = arith.mulf %100, %94 : vector<16x128xf32>
    %c0_32 = arith.constant 0 : index
    %c0_33 = arith.constant 0 : index
    %102 = vector.load %arg4[%c0_32, %c0_33] : memref<1x128xf32, #tpu.memory_space<vmem>>, vector<1x128xf32>
    %103 = vector.extract_strided_slice %89 {offsets = [0, 0], sizes = [16, 1], strides = [1, 1]} : vector<16x2xf32> to vector<16x1xf32>
    %104 = vector.broadcast %103 : vector<16x1xf32> to vector<16x128xf32>
    %105 = vector.broadcast %102 : vector<1x128xf32> to vector<16x128xf32>
    %106 = arith.mulf %104, %105 : vector<16x128xf32>
    %107 = vector.extract_strided_slice %89 {offsets = [0, 1], sizes = [16, 1], strides = [1, 1]} : vector<16x2xf32> to vector<16x1xf32>
    %cst_34 = arith.constant 1.000000e+00 : f32
    %108 = vector.broadcast %cst_34 : f32 to vector<1x128xf32>
    %109 = arith.subf %108, %102 : vector<1x128xf32>
    %110 = vector.broadcast %107 : vector<16x1xf32> to vector<16x128xf32>
    %111 = vector.broadcast %109 : vector<1x128xf32> to vector<16x128xf32>
    %112 = arith.mulf %110, %111 : vector<16x128xf32>
    %113 = arith.addf %106, %112 : vector<16x128xf32>
    %114 = arith.mulf %101, %113 : vector<16x128xf32>
    %115 = arith.truncf %114 : vector<16x128xf32> to vector<16x128xbf16>
    %c0_35 = arith.constant 0 : index
    %c0_36 = arith.constant 0 : index
    %116 = vector.load %arg9[%c0_35, %c0_36] : memref<128x32xbf16, #tpu.memory_space<vmem>>, vector<128x32xbf16>
    %cst_37 = arith.constant dense<0.000000e+00> : vector<16x32xf32>
    %117 = tpu.matmul %115, %116, %cst_37 {dimension_numbers = #tpu.dot_dimension_numbers<[1], [0], [0], [1], [0, 0, 1, 1], [], []>} : vector<16x128xbf16>, vector<128x32xbf16>, vector<16x32xf32> -> vector<16x32xf32>
    %118 = arith.addf %58, %117 : vector<16x32xf32>
    %c0_38 = arith.constant 0 : index
    %c0_39 = arith.constant 0 : index
    %119 = vector.load %arg10[%c0_38, %c0_39] : memref<16x32xf32, #tpu.memory_space<vmem>>, vector<16x32xf32>
    tpu.vector_store %arg10[%c0_38, %c0_39], %118 {strides = array<i32>} : memref<16x32xf32, #tpu.memory_space<vmem>>, vector<16x32xf32>,
    %c0_40 = arith.constant 0 : index
    %c0_41 = arith.constant 0 : index
    %120 = vector.load %arg11[%c0_40, %c0_41] : memref<16x2xf32, #tpu.memory_space<vmem>>, vector<16x2xf32>
    tpu.vector_store %arg11[%c0_40, %c0_41], %80 {strides = array<i32>} : memref<16x2xf32, #tpu.memory_space<vmem>>, vector<16x2xf32>,
    return
  }
}

</mosaic_0001>

<llo_original>
// kernel: aura_decoder_layer.1
$region0: #{aura_decoder_layer.1}
  #allocation0 [shape = 'u32[]', space=smem, size = 0x4, offset = 0x4, fixed_abs, tag = 'smem constant byte address 0x4 - core index']
  #allocation1 [shape = 'u32[72,128]{1,0:T(1,128)}', space=vmem, size = 0x9000, scoped, tag = 'internal scratch']
  %s0 = inlined_call_operand.vmem [shape: f32[16,32], index: 0, kind: input, shape index: {}]
  %s1 = inlined_call_operand.vmem [shape: f32[16,32], index: 1, kind: input, shape index: {}]
  %s2 = inlined_call_operand.vmem [shape: f32[16,32], index: 2, kind: input, shape index: {}]
  %s3 = inlined_call_operand.vmem [shape: f32[16,16], index: 3, kind: input, shape index: {}]
  %s4 = inlined_call_operand.vmem [shape: f32[1,128], index: 4, kind: input, shape index: {}]
  %s5 = inlined_call_operand.vmem [shape: bf16[32,160], index: 5, kind: input, shape index: {}]
  %s6 = inlined_call_operand.vmem [shape: bf16[32,32], index: 6, kind: input, shape index: {}]
  %s7 = inlined_call_operand.vmem [shape: f32[2,32], index: 7, kind: input, shape index: {}]
  %s8 = inlined_call_operand.vmem [shape: bf16[32,256], index: 8, kind: input, shape index: {}]
  %s9 = inlined_call_operand.vmem [shape: bf16[128,32], index: 9, kind: input, shape index: {}]
  %s10 = inlined_call_operand.hbm [shape: f32[16,32], index: 10, kind: output, shape index: {0}]
  %s11 = inlined_call_operand.vmem [shape: f32[16,2], index: 11, kind: output, shape index: {1}]
  %12 = xla_tuple %s10, %s11
  %s13 = sld [smem:[#allocation0]]
  $region58: #{aura_decoder_layer.1} parent=0
    _
  %s15 = ssub.s32 1, %s13
  %s16 = scalar_select 0, %s15, %s13
  $region1: #{aura_decoder_layer.1} parent=0
    #allocation2 [shape = 'u8[8192]{0}', space=vmem, size = 0x2000, scoped, tag = 'output window, operand 0, single buffered']
    #allocation3 [shape = 's32[1]{0}', space=sflag, size = 0x4, scoped, tag = 'scoped memory for aura_decoder_layer.1']
    %17 = vsyncpa [#allocation3], 0
    // Predicated region
    $region2: #{aura_decoder_layer.1} parent=1 // pred_check
      _
    $region3: #{aura_decoder_layer.1} parent=1 // pred_check_branch
      %19 = sbr.rel (0) target = $region5
    $region4: #{aura_decoder_layer.1} parent=1 // pred_region
      _
    $region5: #{aura_decoder_layer.1} parent=1 // pred_fallthru
      _
    // Predicated region
    $region6: #{aura_decoder_layer.1} parent=1 // pred_check
      _
    $region7: #{aura_decoder_layer.1} parent=1 // pred_check_branch
      %21 = sbr.rel (0) target = $region9
    $region8: #{aura_decoder_layer.1} parent=1 // pred_region
      _
    $region9: #{aura_decoder_layer.1} parent=1 // pred_fallthru
      _
    // Predicated region
    $region10: #{aura_decoder_layer.1} parent=1 // pred_check
      _
    $region11: #{aura_decoder_layer.1} parent=1 // pred_check_branch
      %23 = sbr.rel (0) target = $region13
    $region12: #{aura_decoder_layer.1} parent=1 // pred_region
      _
    $region13: #{aura_decoder_layer.1} parent=1 // pred_fallthru
      _
    // Predicated region
    $region14: #{aura_decoder_layer.1} parent=1 // pred_check
      _
    $region15: #{aura_decoder_layer.1} parent=1 // pred_check_branch
      %25 = sbr.rel (0) target = $region17
    $region16: #{aura_decoder_layer.1} parent=1 // pred_region
      _
    $region17: #{aura_decoder_layer.1} parent=1 // pred_fallthru
      _
    // Predicated region
    $region18: #{aura_decoder_layer.1} parent=1 // pred_check
      _
    $region19: #{aura_decoder_layer.1} parent=1 // pred_check_branch
      %27 = sbr.rel (0) target = $region21
    $region20: #{aura_decoder_layer.1} parent=1 // pred_region
      _
    $region21: #{aura_decoder_layer.1} parent=1 // pred_fallthru
      _
    // Predicated region
    $region22: #{aura_decoder_layer.1} parent=1 // pred_check
      _
    $region23: #{aura_decoder_layer.1} parent=1 // pred_check_branch
      %29 = sbr.rel (0) target = $region25
    $region24: #{aura_decoder_layer.1} parent=1 // pred_region
      _
    $region25: #{aura_decoder_layer.1} parent=1 // pred_fallthru
      _
    // Predicated region
    $region26: #{aura_decoder_layer.1} parent=1 // pred_check
      _
    $region27: #{aura_decoder_layer.1} parent=1 // pred_check_branch
      %31 = sbr.rel (0) target = $region29
    $region28: #{aura_decoder_layer.1} parent=1 // pred_region
      _
    $region29: #{aura_decoder_layer.1} parent=1 // pred_fallthru
      _
    // Predicated region
    $region30: #{aura_decoder_layer.1} parent=1 // pred_check
      _
    $region31: #{aura_decoder_layer.1} parent=1 // pred_check_branch
      %33 = sbr.rel (0) target = $region33
    $region32: #{aura_decoder_layer.1} parent=1 // pred_region
      _
    $region33: #{aura_decoder_layer.1} parent=1 // pred_fallthru
      _
    // Predicated region
    $region34: #{aura_decoder_layer.1} parent=1 // pred_check
      _
    $region35: #{aura_decoder_layer.1} parent=1 // pred_check_branch
      %35 = sbr.rel (0) target = $region37
    $region36: #{aura_decoder_layer.1} parent=1 // pred_region
      _
    $region37: #{aura_decoder_layer.1} parent=1 // pred_fallthru
      _
    // Predicated region
    $region38: #{aura_decoder_layer.1} parent=1 // pred_check
      _
    $region39: #{aura_decoder_layer.1} parent=1 // pred_check_branch
      %37 = sbr.rel (0) target = $region41
    $region40: #{aura_decoder_layer.1} parent=1 // pred_region
      _
    $region41: #{aura_decoder_layer.1} parent=1 // pred_fallthru
      _
    %v39 = vld [vmem:[%s0] sm:$0xff]
    %v40 = vld [vmem:[%s0 + $0x8] sm:$0xff]
    %v41 = vmul.f32 %v39, %v39
    %v42 = vmul.f32 %v40, %v40
    %vm43 = vcmask 261120
    %v44 = vsel %vm43, %v41, 0.0
    %45 = vadd.xlane.f32.xlu0 %v44
    %v46 = vpop.xlane.xlu0 %45
    %v47 = vsel %vm43, %v42, 0.0
    %48 = vadd.xlane.f32.xlu0 %v47
    %v49 = vpop.xlane.xlu0 %48
    %v50 = vrcp.pop 32.0
    %v51 = vmul.f32 32.0, %v50
    %v52 = vsub.f32 1.0, %v51
    %v53 = vmul.f32 %v50, %v52
    %v54 = vadd.f32 %v50, %v53
    %vm55 = vweird.f32 %v50
    %v56 = vsel %vm55, %v50, %v54
    %v57 = vmul.f32 %v46, %v56
    %v58 = vmul.f32 %v49, %v56
    %v59 = vadd.f32 %v57, 1e-06
    %v60 = vadd.f32 %v58, 1e-06
    %v61 = vrsqrt.pop %v59
    %v62 = vmul.f32 %v61, %v59
    %v63 = vmul.f32 %v62, %v61
    %v64 = vmul.f32 0.5, %v63
    %v65 = vsub.f32 1.5, %v64
    %v66 = vmul.f32 %v61, %v65
    %vm67 = vweird.f32 %v59
    %vm68 = vweird.f32 %v61
    %vm69 = vmor %vm67, %vm68
    %v70 = vsel %vm69, %v61, %v66
    %v71 = vrsqrt.pop %v60
    %v72 = vmul.f32 %v71, %v60
    %v73 = vmul.f32 %v72, %v71
    %v74 = vmul.f32 0.5, %v73
    %v75 = vsub.f32 1.5, %v74
    %v76 = vmul.f32 %v71, %v75
    %vm77 = vweird.f32 %v60
    %vm78 = vweird.f32 %v71
    %vm79 = vmor %vm77, %vm78
    %v80 = vsel %vm79, %v71, %v76
    %v81 = vmul.f32 %v39, %v70
    %v82 = vmul.f32 %v40, %v80
    %v83 = vpack.c.bf16 %v82, %v81
    %v84 = vld [vmem:[%s5] sm:$0xff]
    %v85 = vld [vmem:[%s5 + $0x8] sm:$0xff]
    %v86 = vld [vmem:[%s5 + $0x10] sm:$0xff]
    %v87 = vld [vmem:[%s5 + $0x18] sm:$0xff]
    %v92 = vunpack.c.l.b16 %v84
    %v93 = vunpack.c.h.b16 %v84
    %v94 = vunpack.c.l.b16 %v85
    %v95 = vunpack.c.h.b16 %v85
    %v96 = vunpack.c.l.b16 %v86
    %v97 = vunpack.c.h.b16 %v86
    %v98 = vunpack.c.l.b16 %v87
    %v99 = vunpack.c.h.b16 %v87
    %v100 = vpack.c.b16 %v94, %v92
    %v101 = vpack.c.b16 %v95, %v93
    %v102 = vpack.c.b16 %v98, %v96
    %v103 = vpack.c.b16 %v99, %v97
    %v109 = vsel %vm43, %v83, 0
    %111 = vmatpush.bf16.msra.mxu0 0
    %112 = vmatpush.bf16.msra.mxu0 0
    %113 = vmatpush.bf16.msra.mxu0 0
    %114 = vmatpush.bf16.msra.mxu0 0
    %115 = vmatpush.bf16.msra.mxu0 0
    %116 = vmatpush.bf16.msra.mxu0 0
    %117 = vmatpush.bf16.msra.mxu0 %v102
    %118 = vmatpush.bf16.msra.mxu0 %v100
    %119 = vmatmul.bf16.gmra.mxu0 %v109
    %v120 = vpop.f32.mrf.mxu0
    %v121 = vadd.f32 0.0, %v120
    %v122 = vpop.f32.mrf.mxu0
    %v123 = vadd.f32 0.0, %v122
    %124 = vdwg.mxu0
    %125 = vmatpush.bf16.msra.mxu0 0
    %126 = vmatpush.bf16.msra.mxu0 0
    %127 = vmatpush.bf16.msra.mxu0 0
    %128 = vmatpush.bf16.msra.mxu0 0
    %129 = vmatpush.bf16.msra.mxu0 0
    %130 = vmatpush.bf16.msra.mxu0 0
    %131 = vmatpush.bf16.msra.mxu0 %v103
    %132 = vmatpush.bf16.msra.mxu0 %v101
    %133 = vmatmul.bf16.gmra.mxu0 %v109
    %v134 = vpop.f32.mrf.mxu0
    %v135 = vadd.f32 0.0, %v134
    %v136 = vpop.f32.mrf.mxu0
    %v137 = vadd.f32 0.0, %v136
    %138 = vdwg.mxu0
    %v139 = vld [vmem:[%s1] sm:$0xff]
    %v140 = vld [vmem:[%s1 + $0x8] sm:$0xff]
    %v141 = vld [vmem:[%s2] sm:$0xff]
    %v142 = vld [vmem:[%s2 + $0x8] sm:$0xff]
    %v143 = vmul.f32 %v121, %v139
    %v144 = vmul.f32 %v123, %v140
    %147 = vrot.lane.b32.xlu0 %v141, 96
    %v148 = vpop.permute.xlu0 %147
    %149 = vrot.lane.b32.xlu0 %v142, 96
    %v150 = vpop.permute.xlu0 %149
    %v153 = vmul.f32 %v121, %v148
    %v154 = vmul.f32 %v123, %v150
    %157 = vrot.lane.b32.xlu0 %v153, 32
    %v158 = vpop.permute.xlu0 %157
    %159 = vrot.lane.b32.xlu0 %v154, 32
    %v160 = vpop.permute.xlu0 %159
    %v163 = vadd.f32 %v143, %v158
    %v164 = vadd.f32 %v144, %v160
    %167 = vrot.lane.b32.xlu0 %v139, 32
    %v168 = vpop.permute.xlu0 %167
    %169 = vrot.lane.b32.xlu0 %v140, 32
    %v170 = vpop.permute.xlu0 %169
    %v173 = vmul.f32 %v121, %v168
    %v174 = vmul.f32 %v123, %v170
    %v175 = vmul.f32 %v135, %v141
    %v176 = vmul.f32 %v137, %v142
    %179 = vrot.lane.b32.xlu0 %v175, 32
    %v180 = vpop.permute.xlu0 %179
    %181 = vrot.lane.b32.xlu0 %v176, 32
    %v182 = vpop.permute.xlu0 %181
    %v185 = vadd.f32 %v173, %v180
    %v186 = vadd.f32 %v174, %v182
    %189 = vrot.lane.b32.xlu0 %v163, 120
    %v190 = vpop.permute.xlu0 %189
    %191 = vrot.lane.b32.xlu0 %v164, 120
    %v192 = vpop.permute.xlu0 %191
    %195 = vrot.lane.b32.xlu0 %v163, 112
    %v196 = vpop.permute.xlu0 %195
    %197 = vrot.lane.b32.xlu0 %v164, 112
    %v198 = vpop.permute.xlu0 %197
    %201 = vrot.lane.b32.xlu0 %v163, 104
    %v202 = vpop.permute.xlu0 %201
    %203 = vrot.lane.b32.xlu0 %v164, 104
    %v204 = vpop.permute.xlu0 %203
    %v207 = vrot.slane %v196, 4
    %vm208 = vcmask 1047556
    %v209 = vsel %vm208, %v207, %v163
    %v210 = vrot.slane %v163, 4
    %v211 = vsel %vm208, %v196, %v210
    %v213 = vunpack.c.l.s4 1983009808
    %v214 = vunpack.c.0.s8 %v213
    %v215 = vperm.slane %v209, %v214
    %v217 = vunpack.c.l.s4 1983009808
    %v218 = vunpack.c.0.s8 %v217
    %v219 = vperm.slane %v211, %v218
    %v220 = vrot.slane %v202, 4
    %v221 = vsel %vm208, %v220, %v190
    %v222 = vrot.slane %v190, 4
    %v223 = vsel %vm208, %v202, %v222
    %v225 = vunpack.c.l.s4 1983009808
    %v226 = vunpack.c.0.s8 %v225
    %v227 = vperm.slane %v221, %v226
    %v229 = vunpack.c.l.s4 1983009808
    %v230 = vunpack.c.0.s8 %v229
    %v231 = vperm.slane %v223, %v230
    %v232 = vrot.slane %v227, 4
    %v233 = vsel %vm208, %v232, %v215
    %v234 = vrot.slane %v215, 4
    %v235 = vsel %vm208, %v227, %v234
    %v237 = vunpack.c.l.s4 1934713408
    %v238 = vunpack.c.0.s8 %v237
    %v239 = vperm.slane %v233, %v238
    %v241 = vunpack.c.l.s4 1934713408
    %v242 = vunpack.c.0.s8 %v241
    %v243 = vperm.slane %v235, %v242
    %v244 = vrot.slane %v231, 4
    %v245 = vsel %vm208, %v244, %v219
    %v246 = vrot.slane %v219, 4
    %v247 = vsel %vm208, %v231, %v246
    %v249 = vunpack.c.l.s4 1934713408
    %v250 = vunpack.c.0.s8 %v249
    %v251 = vperm.slane %v245, %v250
    %v253 = vunpack.c.l.s4 1934713408
    %v254 = vunpack.c.0.s8 %v253
    %v255 = vperm.slane %v247, %v254
    %v256 = vrot.slane %v239, 4
    %v257 = vsel %vm208, 0.0, %v256
    %v258 = vrot.slane %v243, 4
    %v259 = vsel %vm208, 0.0, %v258
    %v260 = vrot.slane %v251, 4
    %v261 = vsel %vm208, 0.0, %v260
    %v262 = vrot.slane %v255, 4
    %v263 = vsel %vm208, 0.0, %v262
    %v264 = vrot.slane %v198, 4
    %v265 = vsel %vm208, %v264, %v164
    %v266 = vrot.slane %v164, 4
    %v267 = vsel %vm208, %v198, %v266
    %v269 = vunpack.c.l.s4 1983009808
    %v270 = vunpack.c.0.s8 %v269
    %v271 = vperm.slane %v265, %v270
    %v273 = vunpack.c.l.s4 1983009808
    %v274 = vunpack.c.0.s8 %v273
    %v275 = vperm.slane %v267, %v274
    %v276 = vrot.slane %v204, 4
    %v277 = vsel %vm208, %v276, %v192
    %v278 = vrot.slane %v192, 4
    %v279 = vsel %vm208, %v204, %v278
    %v281 = vunpack.c.l.s4 1983009808
    %v282 = vunpack.c.0.s8 %v281
    %v283 = vperm.slane %v277, %v282
    %v285 = vunpack.c.l.s4 1983009808
    %v286 = vunpack.c.0.s8 %v285
    %v287 = vperm.slane %v279, %v286
    %v288 = vrot.slane %v283, 4
    %v289 = vsel %vm208, %v288, %v271
    %v290 = vrot.slane %v271, 4
    %v291 = vsel %vm208, %v283, %v290
    %v293 = vunpack.c.l.s4 1934713408
    %v294 = vunpack.c.0.s8 %v293
    %v295 = vperm.slane %v289, %v294
    %v297 = vunpack.c.l.s4 1934713408
    %v298 = vunpack.c.0.s8 %v297
    %v299 = vperm.slane %v291, %v298
    %v300 = vrot.slane %v287, 4
    %v301 = vsel %vm208, %v300, %v275
    %v302 = vrot.slane %v275, 4
    %v303 = vsel %vm208, %v287, %v302
    %v305 = vunpack.c.l.s4 1934713408
    %v306 = vunpack.c.0.s8 %v305
    %v307 = vperm.slane %v301, %v306
    %v309 = vunpack.c.l.s4 1934713408
    %v310 = vunpack.c.0.s8 %v309
    %v311 = vperm.slane %v303, %v310
    %v312 = vrot.slane %v295, 4
    %v313 = vsel %vm208, 0.0, %v312
    %v314 = vrot.slane %v299, 4
    %v315 = vsel %vm208, 0.0, %v314
    %v316 = vrot.slane %v307, 4
    %v317 = vsel %vm208, 0.0, %v316
    %v318 = vrot.slane %v311, 4
    %v319 = vsel %vm208, 0.0, %v318
    %v320 = vsel %vm208, %v258, %v239
    %v322 = vunpack.c.l.s4 1983009808
    %v323 = vunpack.c.0.s8 %v322
    %v324 = vperm.slane %v320, %v323
    %v325 = vrot.slane %v259, 4
    %v326 = vsel %vm208, %v325, %v257
    %v328 = vunpack.c.l.s4 1983009808
    %v329 = vunpack.c.0.s8 %v328
    %v330 = vperm.slane %v326, %v329
    %v331 = vsel %vm208, %v262, %v251
    %v333 = vunpack.c.l.s4 1983009808
    %v334 = vunpack.c.0.s8 %v333
    %v335 = vperm.slane %v331, %v334
    %v336 = vrot.slane %v263, 4
    %v337 = vsel %vm208, %v336, %v261
    %v339 = vunpack.c.l.s4 1983009808
    %v340 = vunpack.c.0.s8 %v339
    %v341 = vperm.slane %v337, %v340
    %v342 = vrot.slane %v330, 4
    %v343 = vsel %vm208, %v342, %v324
    %v344 = vrot.slane %v324, 4
    %v345 = vsel %vm208, %v330, %v344
    %v347 = vunpack.c.l.s4 1934713408
    %v348 = vunpack.c.0.s8 %v347
    %v349 = vperm.slane %v343, %v348
    %v351 = vunpack.c.l.s4 1934713408
    %v352 = vunpack.c.0.s8 %v351
    %v353 = vperm.slane %v345, %v352
    %v354 = vrot.slane %v341, 4
    %v355 = vsel %vm208, %v354, %v335
    %v356 = vrot.slane %v335, 4
    %v357 = vsel %vm208, %v341, %v356
    %v359 = vunpack.c.l.s4 1934713408
    %v360 = vunpack.c.0.s8 %v359
    %v361 = vperm.slane %v355, %v360
    %v363 = vunpack.c.l.s4 1934713408
    %v364 = vunpack.c.0.s8 %v363
    %v365 = vperm.slane %v357, %v364
    %v366 = vrot.slane %v361, 4
    %v367 = vsel %vm208, %v366, %v349
    %v368 = vrot.slane %v349, 4
    %v369 = vsel %vm208, %v361, %v368
    %v370 = vrot.slane %v365, 4
    %v371 = vsel %vm208, %v370, %v353
    %v372 = vrot.slane %v353, 4
    %v373 = vsel %vm208, %v365, %v372
    %v374 = vsel %vm208, %v314, %v295
    %v376 = vunpack.c.l.s4 1983009808
    %v377 = vunpack.c.0.s8 %v376
    %v378 = vperm.slane %v374, %v377
    %v379 = vrot.slane %v315, 4
    %v380 = vsel %vm208, %v379, %v313
    %v382 = vunpack.c.l.s4 1983009808
    %v383 = vunpack.c.0.s8 %v382
    %v384 = vperm.slane %v380, %v383
    %v385 = vsel %vm208, %v318, %v307
    %v387 = vunpack.c.l.s4 1983009808
    %v388 = vunpack.c.0.s8 %v387
    %v389 = vperm.slane %v385, %v388
    %v390 = vrot.slane %v319, 4
    %v391 = vsel %vm208, %v390, %v317
    %v393 = vunpack.c.l.s4 1983009808
    %v394 = vunpack.c.0.s8 %v393
    %v395 = vperm.slane %v391, %v394
    %v396 = vrot.slane %v384, 4
    %v397 = vsel %vm208, %v396, %v378
    %v398 = vrot.slane %v378, 4
    %v399 = vsel %vm208, %v384, %v398
    %v401 = vunpack.c.l.s4 1934713408
    %v402 = vunpack.c.0.s8 %v401
    %v403 = vperm.slane %v397, %v402
    %v405 = vunpack.c.l.s4 1934713408
    %v406 = vunpack.c.0.s8 %v405
    %v407 = vperm.slane %v399, %v406
    %v408 = vrot.slane %v395, 4
    %v409 = vsel %vm208, %v408, %v389
    %v410 = vrot.slane %v389, 4
    %v411 = vsel %vm208, %v395, %v410
    %v413 = vunpack.c.l.s4 1934713408
    %v414 = vunpack.c.0.s8 %v413
    %v415 = vperm.slane %v409, %v414
    %v417 = vunpack.c.l.s4 1934713408
    %v418 = vunpack.c.0.s8 %v417
    %v419 = vperm.slane %v411, %v418
    %v420 = vrot.slane %v415, 4
    %v421 = vsel %vm208, %v420, %v403
    %v422 = vrot.slane %v403, 4
    %v423 = vsel %vm208, %v415, %v422
    %v424 = vrot.slane %v419, 4
    %v425 = vsel %vm208, %v424, %v407
    %v426 = vrot.slane %v407, 4
    %v427 = vsel %vm208, %v419, %v426
    %v428 = vpack.c.bf16 %v367, %v367
    %v429 = vpack.c.bf16 %v421, %v421
    %v430 = vpack.c.bf16 %v369, %v369
    %v431 = vpack.c.bf16 %v423, %v423
    %v432 = vpack.c.bf16 %v371, %v371
    %v433 = vpack.c.bf16 %v425, %v425
    %v434 = vpack.c.bf16 %v373, %v373
    %v435 = vpack.c.bf16 %v427, %v427
    %438 = vrot.lane.b32.xlu0 %v185, 120
    %v439 = vpop.permute.xlu0 %438
    %440 = vrot.lane.b32.xlu0 %v186, 120
    %v441 = vpop.permute.xlu0 %440
    %442 = vrot.lane.b32.xlu0 %v185, 112
    %v443 = vpop.permute.xlu0 %442
    %444 = vrot.lane.b32.xlu0 %v186, 112
    %v445 = vpop.permute.xlu0 %444
    %446 = vrot.lane.b32.xlu0 %v185, 104
    %v447 = vpop.permute.xlu0 %446
    %448 = vrot.lane.b32.xlu0 %v186, 104
    %v449 = vpop.permute.xlu0 %448
    %450 = vrot.lane.b32.xlu0 %v185, 96
    %v451 = vpop.permute.xlu0 %450
    %452 = vrot.lane.b32.xlu0 %v186, 96
    %v453 = vpop.permute.xlu0 %452
    %454 = vrot.lane.b32.xlu0 %v439, 96
    %v455 = vpop.permute.xlu0 %454
    %456 = vrot.lane.b32.xlu0 %v441, 96
    %v457 = vpop.permute.xlu0 %456
    %458 = vrot.lane.b32.xlu0 %v443, 96
    %v459 = vpop.permute.xlu0 %458
    %460 = vrot.lane.b32.xlu0 %v445, 96
    %v461 = vpop.permute.xlu0 %460
    %462 = vrot.lane.b32.xlu0 %v447, 96
    %v463 = vpop.permute.xlu0 %462
    %464 = vrot.lane.b32.xlu0 %v449, 96
    %v465 = vpop.permute.xlu0 %464
    %v474 = vrot.slane %v459, 4
    %v475 = vsel %vm208, %v474, %v451
    %v476 = vrot.slane %v451, 4
    %v477 = vsel %vm208, %v459, %v476
    %v479 = vunpack.c.l.s4 1983009808
    %v480 = vunpack.c.0.s8 %v479
    %v481 = vperm.slane %v475, %v480
    %v483 = vunpack.c.l.s4 1983009808
    %v484 = vunpack.c.0.s8 %v483
    %v485 = vperm.slane %v477, %v484
    %v486 = vrot.slane %v463, 4
    %v487 = vsel %vm208, %v486, %v455
    %v488 = vrot.slane %v455, 4
    %v489 = vsel %vm208, %v463, %v488
    %v491 = vunpack.c.l.s4 1983009808
    %v492 = vunpack.c.0.s8 %v491
    %v493 = vperm.slane %v487, %v492
    %v495 = vunpack.c.l.s4 1983009808
    %v496 = vunpack.c.0.s8 %v495
    %v497 = vperm.slane %v489, %v496
    %v498 = vrot.slane %v493, 4
    %v499 = vsel %vm208, %v498, %v481
    %v500 = vrot.slane %v481, 4
    %v501 = vsel %vm208, %v493, %v500
    %v503 = vunpack.c.l.s4 1934713408
    %v504 = vunpack.c.0.s8 %v503
    %v505 = vperm.slane %v499, %v504
    %v507 = vunpack.c.l.s4 1934713408
    %v508 = vunpack.c.0.s8 %v507
    %v509 = vperm.slane %v501, %v508
    %v510 = vrot.slane %v497, 4
    %v511 = vsel %vm208, %v510, %v485
    %v512 = vrot.slane %v485, 4
    %v513 = vsel %vm208, %v497, %v512
    %v515 = vunpack.c.l.s4 1934713408
    %v516 = vunpack.c.0.s8 %v515
    %v517 = vperm.slane %v511, %v516
    %v519 = vunpack.c.l.s4 1934713408
    %v520 = vunpack.c.0.s8 %v519
    %v521 = vperm.slane %v513, %v520
    %v522 = vrot.slane %v505, 4
    %v523 = vsel %vm208, 0.0, %v522
    %v524 = vrot.slane %v509, 4
    %v525 = vsel %vm208, 0.0, %v524
    %v526 = vrot.slane %v517, 4
    %v527 = vsel %vm208, 0.0, %v526
    %v528 = vrot.slane %v521, 4
    %v529 = vsel %vm208, 0.0, %v528
    %v530 = vrot.slane %v461, 4
    %v531 = vsel %vm208, %v530, %v453
    %v532 = vrot.slane %v453, 4
    %v533 = vsel %vm208, %v461, %v532
    %v535 = vunpack.c.l.s4 1983009808
    %v536 = vunpack.c.0.s8 %v535
    %v537 = vperm.slane %v531, %v536
    %v539 = vunpack.c.l.s4 1983009808
    %v540 = vunpack.c.0.s8 %v539
    %v541 = vperm.slane %v533, %v540
    %v542 = vrot.slane %v465, 4
    %v543 = vsel %vm208, %v542, %v457
    %v544 = vrot.slane %v457, 4
    %v545 = vsel %vm208, %v465, %v544
    %v547 = vunpack.c.l.s4 1983009808
    %v548 = vunpack.c.0.s8 %v547
    %v549 = vperm.slane %v543, %v548
    %v551 = vunpack.c.l.s4 1983009808
    %v552 = vunpack.c.0.s8 %v551
    %v553 = vperm.slane %v545, %v552
    %v554 = vrot.slane %v549, 4
    %v555 = vsel %vm208, %v554, %v537
    %v556 = vrot.slane %v537, 4
    %v557 = vsel %vm208, %v549, %v556
    %v559 = vunpack.c.l.s4 1934713408
    %v560 = vunpack.c.0.s8 %v559
    %v561 = vperm.slane %v555, %v560
    %v563 = vunpack.c.l.s4 1934713408
    %v564 = vunpack.c.0.s8 %v563
    %v565 = vperm.slane %v557, %v564
    %v566 = vrot.slane %v553, 4
    %v567 = vsel %vm208, %v566, %v541
    %v568 = vrot.slane %v541, 4
    %v569 = vsel %vm208, %v553, %v568
    %v571 = vunpack.c.l.s4 1934713408
    %v572 = vunpack.c.0.s8 %v571
    %v573 = vperm.slane %v567, %v572
    %v575 = vunpack.c.l.s4 1934713408
    %v576 = vunpack.c.0.s8 %v575
    %v577 = vperm.slane %v569, %v576
    %v578 = vrot.slane %v561, 4
    %v579 = vsel %vm208, 0.0, %v578
    %v580 = vrot.slane %v565, 4
    %v581 = vsel %vm208, 0.0, %v580
    %v582 = vrot.slane %v573, 4
    %v583 = vsel %vm208, 0.0, %v582
    %v584 = vrot.slane %v577, 4
    %v585 = vsel %vm208, 0.0, %v584
    %v586 = vsel %vm208, %v524, %v505
    %v588 = vunpack.c.l.s4 1983009808
    %v589 = vunpack.c.0.s8 %v588
    %v590 = vperm.slane %v586, %v589
    %v591 = vrot.slane %v525, 4
    %v592 = vsel %vm208, %v591, %v523
    %v594 = vunpack.c.l.s4 1983009808
    %v595 = vunpack.c.0.s8 %v594
    %v596 = vperm.slane %v592, %v595
    %v597 = vsel %vm208, %v528, %v517
    %v599 = vunpack.c.l.s4 1983009808
    %v600 = vunpack.c.0.s8 %v599
    %v601 = vperm.slane %v597, %v600
    %v602 = vrot.slane %v529, 4
    %v603 = vsel %vm208, %v602, %v527
    %v605 = vunpack.c.l.s4 1983009808
    %v606 = vunpack.c.0.s8 %v605
    %v607 = vperm.slane %v603, %v606
    %v608 = vrot.slane %v596, 4
    %v609 = vsel %vm208, %v608, %v590
    %v610 = vrot.slane %v590, 4
    %v611 = vsel %vm208, %v596, %v610
    %v613 = vunpack.c.l.s4 1934713408
    %v614 = vunpack.c.0.s8 %v613
    %v615 = vperm.slane %v609, %v614
    %v617 = vunpack.c.l.s4 1934713408
    %v618 = vunpack.c.0.s8 %v617
    %v619 = vperm.slane %v611, %v618
    %v620 = vrot.slane %v607, 4
    %v621 = vsel %vm208, %v620, %v601
    %v622 = vrot.slane %v601, 4
    %v623 = vsel %vm208, %v607, %v622
    %v625 = vunpack.c.l.s4 1934713408
    %v626 = vunpack.c.0.s8 %v625
    %v627 = vperm.slane %v621, %v626
    %v629 = vunpack.c.l.s4 1934713408
    %v630 = vunpack.c.0.s8 %v629
    %v631 = vperm.slane %v623, %v630
    %v632 = vrot.slane %v627, 4
    %v633 = vsel %vm208, %v632, %v615
    %v634 = vrot.slane %v615, 4
    %v635 = vsel %vm208, %v627, %v634
    %v636 = vrot.slane %v631, 4
    %v637 = vsel %vm208, %v636, %v619
    %v638 = vrot.slane %v619, 4
    %v639 = vsel %vm208, %v631, %v638
    %v640 = vsel %vm208, %v580, %v561
    %v642 = vunpack.c.l.s4 1983009808
    %v643 = vunpack.c.0.s8 %v642
    %v644 = vperm.slane %v640, %v643
    %v645 = vrot.slane %v581, 4
    %v646 = vsel %vm208, %v645, %v579
    %v648 = vunpack.c.l.s4 1983009808
    %v649 = vunpack.c.0.s8 %v648
    %v650 = vperm.slane %v646, %v649
    %v651 = vsel %vm208, %v584, %v573
    %v653 = vunpack.c.l.s4 1983009808
    %v654 = vunpack.c.0.s8 %v653
    %v655 = vperm.slane %v651, %v654
    %v656 = vrot.slane %v585, 4
    %v657 = vsel %vm208, %v656, %v583
    %v659 = vunpack.c.l.s4 1983009808
    %v660 = vunpack.c.0.s8 %v659
    %v661 = vperm.slane %v657, %v660
    %v662 = vrot.slane %v650, 4
    %v663 = vsel %vm208, %v662, %v644
    %v664 = vrot.slane %v644, 4
    %v665 = vsel %vm208, %v650, %v664
    %v667 = vunpack.c.l.s4 1934713408
    %v668 = vunpack.c.0.s8 %v667
    %v669 = vperm.slane %v663, %v668
    %v671 = vunpack.c.l.s4 1934713408
    %v672 = vunpack.c.0.s8 %v671
    %v673 = vperm.slane %v665, %v672
    %v674 = vrot.slane %v661, 4
    %v675 = vsel %vm208, %v674, %v655
    %v676 = vrot.slane %v655, 4
    %v677 = vsel %vm208, %v661, %v676
    %v679 = vunpack.c.l.s4 1934713408
    %v680 = vunpack.c.0.s8 %v679
    %v681 = vperm.slane %v675, %v680
    %v683 = vunpack.c.l.s4 1934713408
    %v684 = vunpack.c.0.s8 %v683
    %v685 = vperm.slane %v677, %v684
    %v686 = vrot.slane %v681, 4
    %v687 = vsel %vm208, %v686, %v669
    %v688 = vrot.slane %v669, 4
    %v689 = vsel %vm208, %v681, %v688
    %v690 = vrot.slane %v685, 4
    %v691 = vsel %vm208, %v690, %v673
    %v692 = vrot.slane %v673, 4
    %v693 = vsel %vm208, %v685, %v692
    %v694 = vpack.c.bf16 %v633, %v633
    %v695 = vpack.c.bf16 %v687, %v687
    %v696 = vpack.c.bf16 %v635, %v635
    %v697 = vpack.c.bf16 %v689, %v689
    %v698 = vpack.c.bf16 %v637, %v637
    %v699 = vpack.c.bf16 %v691, %v691
    %v700 = vpack.c.bf16 %v639, %v639
    %v701 = vpack.c.bf16 %v693, %v693
    %704 = vrot.lane.b32.xlu0 %v121, 120
    %v705 = vpop.permute.xlu0 %704
    %706 = vrot.lane.b32.xlu0 %v123, 120
    %v707 = vpop.permute.xlu0 %706
    %708 = vrot.lane.b32.xlu0 %v121, 112
    %v709 = vpop.permute.xlu0 %708
    %710 = vrot.lane.b32.xlu0 %v123, 112
    %v711 = vpop.permute.xlu0 %710
    %712 = vrot.lane.b32.xlu0 %v121, 104
    %v713 = vpop.permute.xlu0 %712
    %714 = vrot.lane.b32.xlu0 %v123, 104
    %v715 = vpop.permute.xlu0 %714
    %716 = vrot.lane.b32.xlu0 %v121, 64
    %v717 = vpop.permute.xlu0 %716
    %718 = vrot.lane.b32.xlu0 %v123, 64
    %v719 = vpop.permute.xlu0 %718
    %720 = vrot.lane.b32.xlu0 %v705, 64
    %v721 = vpop.permute.xlu0 %720
    %722 = vrot.lane.b32.xlu0 %v707, 64
    %v723 = vpop.permute.xlu0 %722
    %724 = vrot.lane.b32.xlu0 %v709, 64
    %v725 = vpop.permute.xlu0 %724
    %726 = vrot.lane.b32.xlu0 %v711, 64
    %v727 = vpop.permute.xlu0 %726
    %728 = vrot.lane.b32.xlu0 %v713, 64
    %v729 = vpop.permute.xlu0 %728
    %730 = vrot.lane.b32.xlu0 %v715, 64
    %v731 = vpop.permute.xlu0 %730
    %v740 = vrot.slane %v725, 4
    %v741 = vsel %vm208, %v740, %v717
    %v742 = vrot.slane %v717, 4
    %v743 = vsel %vm208, %v725, %v742
    %v745 = vunpack.c.l.s4 1983009808
    %v746 = vunpack.c.0.s8 %v745
    %v747 = vperm.slane %v741, %v746
    %v749 = vunpack.c.l.s4 1983009808
    %v750 = vunpack.c.0.s8 %v749
    %v751 = vperm.slane %v743, %v750
    %v752 = vrot.slane %v729, 4
    %v753 = vsel %vm208, %v752, %v721
    %v754 = vrot.slane %v721, 4
    %v755 = vsel %vm208, %v729, %v754
    %v757 = vunpack.c.l.s4 1983009808
    %v758 = vunpack.c.0.s8 %v757
    %v759 = vperm.slane %v753, %v758
    %v761 = vunpack.c.l.s4 1983009808
    %v762 = vunpack.c.0.s8 %v761
    %v763 = vperm.slane %v755, %v762
    %v764 = vrot.slane %v759, 4
    %v765 = vsel %vm208, %v764, %v747
    %v766 = vrot.slane %v747, 4
    %v767 = vsel %vm208, %v759, %v766
    %v769 = vunpack.c.l.s4 1934713408
    %v770 = vunpack.c.0.s8 %v769
    %v771 = vperm.slane %v765, %v770
    %v773 = vunpack.c.l.s4 1934713408
    %v774 = vunpack.c.0.s8 %v773
    %v775 = vperm.slane %v767, %v774
    %v776 = vrot.slane %v763, 4
    %v777 = vsel %vm208, %v776, %v751
    %v778 = vrot.slane %v751, 4
    %v779 = vsel %vm208, %v763, %v778
    %v781 = vunpack.c.l.s4 1934713408
    %v782 = vunpack.c.0.s8 %v781
    %v783 = vperm.slane %v777, %v782
    %v785 = vunpack.c.l.s4 1934713408
    %v786 = vunpack.c.0.s8 %v785
    %v787 = vperm.slane %v779, %v786
    %v788 = vrot.slane %v771, 4
    %v789 = vsel %vm208, 0.0, %v788
    %v790 = vrot.slane %v775, 4
    %v791 = vsel %vm208, 0.0, %v790
    %v792 = vrot.slane %v783, 4
    %v793 = vsel %vm208, 0.0, %v792
    %v794 = vrot.slane %v787, 4
    %v795 = vsel %vm208, 0.0, %v794
    %v796 = vrot.slane %v727, 4
    %v797 = vsel %vm208, %v796, %v719
    %v798 = vrot.slane %v719, 4
    %v799 = vsel %vm208, %v727, %v798
    %v801 = vunpack.c.l.s4 1983009808
    %v802 = vunpack.c.0.s8 %v801
    %v803 = vperm.slane %v797, %v802
    %v805 = vunpack.c.l.s4 1983009808
    %v806 = vunpack.c.0.s8 %v805
    %v807 = vperm.slane %v799, %v806
    %v808 = vrot.slane %v731, 4
    %v809 = vsel %vm208, %v808, %v723
    %v810 = vrot.slane %v723, 4
    %v811 = vsel %vm208, %v731, %v810
    %v813 = vunpack.c.l.s4 1983009808
    %v814 = vunpack.c.0.s8 %v813
    %v815 = vperm.slane %v809, %v814
    %v817 = vunpack.c.l.s4 1983009808
    %v818 = vunpack.c.0.s8 %v817
    %v819 = vperm.slane %v811, %v818
    %v820 = vrot.slane %v815, 4
    %v821 = vsel %vm208, %v820, %v803
    %v822 = vrot.slane %v803, 4
    %v823 = vsel %vm208, %v815, %v822
    %v825 = vunpack.c.l.s4 1934713408
    %v826 = vunpack.c.0.s8 %v825
    %v827 = vperm.slane %v821, %v826
    %v829 = vunpack.c.l.s4 1934713408
    %v830 = vunpack.c.0.s8 %v829
    %v831 = vperm.slane %v823, %v830
    %v832 = vrot.slane %v819, 4
    %v833 = vsel %vm208, %v832, %v807
    %v834 = vrot.slane %v807, 4
    %v835 = vsel %vm208, %v819, %v834
    %v837 = vunpack.c.l.s4 1934713408
    %v838 = vunpack.c.0.s8 %v837
    %v839 = vperm.slane %v833, %v838
    %v841 = vunpack.c.l.s4 1934713408
    %v842 = vunpack.c.0.s8 %v841
    %v843 = vperm.slane %v835, %v842
    %v844 = vrot.slane %v827, 4
    %v845 = vsel %vm208, 0.0, %v844
    %v846 = vrot.slane %v831, 4
    %v847 = vsel %vm208, 0.0, %v846
    %v848 = vrot.slane %v839, 4
    %v849 = vsel %vm208, 0.0, %v848
    %v850 = vrot.slane %v843, 4
    %v851 = vsel %vm208, 0.0, %v850
    %v852 = vsel %vm208, %v790, %v771
    %v854 = vunpack.c.l.s4 1983009808
    %v855 = vunpack.c.0.s8 %v854
    %v856 = vperm.slane %v852, %v855
    %v857 = vrot.slane %v791, 4
    %v858 = vsel %vm208, %v857, %v789
    %v860 = vunpack.c.l.s4 1983009808
    %v861 = vunpack.c.0.s8 %v860
    %v862 = vperm.slane %v858, %v861
    %v863 = vsel %vm208, %v794, %v783
    %v865 = vunpack.c.l.s4 1983009808
    %v866 = vunpack.c.0.s8 %v865
    %v867 = vperm.slane %v863, %v866
    %v868 = vrot.slane %v795, 4
    %v869 = vsel %vm208, %v868, %v793
    %v871 = vunpack.c.l.s4 1983009808
    %v872 = vunpack.c.0.s8 %v871
    %v873 = vperm.slane %v869, %v872
    %v874 = vrot.slane %v862, 4
    %v875 = vsel %vm208, %v874, %v856
    %v876 = vrot.slane %v856, 4
    %v877 = vsel %vm208, %v862, %v876
    %v879 = vunpack.c.l.s4 1934713408
    %v880 = vunpack.c.0.s8 %v879
    %v881 = vperm.slane %v875, %v880
    %v883 = vunpack.c.l.s4 1934713408
    %v884 = vunpack.c.0.s8 %v883
    %v885 = vperm.slane %v877, %v884
    %v886 = vrot.slane %v873, 4
    %v887 = vsel %vm208, %v886, %v867
    %v888 = vrot.slane %v867, 4
    %v889 = vsel %vm208, %v873, %v888
    %v891 = vunpack.c.l.s4 1934713408
    %v892 = vunpack.c.0.s8 %v891
    %v893 = vperm.slane %v887, %v892
    %v895 = vunpack.c.l.s4 1934713408
    %v896 = vunpack.c.0.s8 %v895
    %v897 = vperm.slane %v889, %v896
    %v898 = vrot.slane %v893, 4
    %v899 = vsel %vm208, %v898, %v881
    %v900 = vrot.slane %v881, 4
    %v901 = vsel %vm208, %v893, %v900
    %v902 = vrot.slane %v897, 4
    %v903 = vsel %vm208, %v902, %v885
    %v904 = vrot.slane %v885, 4
    %v905 = vsel %vm208, %v897, %v904
    %v906 = vsel %vm208, %v846, %v827
    %v908 = vunpack.c.l.s4 1983009808
    %v909 = vunpack.c.0.s8 %v908
    %v910 = vperm.slane %v906, %v909
    %v911 = vrot.slane %v847, 4
    %v912 = vsel %vm208, %v911, %v845
    %v914 = vunpack.c.l.s4 1983009808
    %v915 = vunpack.c.0.s8 %v914
    %v916 = vperm.slane %v912, %v915
    %v917 = vsel %vm208, %v850, %v839
    %v919 = vunpack.c.l.s4 1983009808
    %v920 = vunpack.c.0.s8 %v919
    %v921 = vperm.slane %v917, %v920
    %v922 = vrot.slane %v851, 4
    %v923 = vsel %vm208, %v922, %v849
    %v925 = vunpack.c.l.s4 1983009808
    %v926 = vunpack.c.0.s8 %v925
    %v927 = vperm.slane %v923, %v926
    %v928 = vrot.slane %v916, 4
    %v929 = vsel %vm208, %v928, %v910
    %v930 = vrot.slane %v910, 4
    %v931 = vsel %vm208, %v916, %v930
    %v933 = vunpack.c.l.s4 1934713408
    %v934 = vunpack.c.0.s8 %v933
    %v935 = vperm.slane %v929, %v934
    %v937 = vunpack.c.l.s4 1934713408
    %v938 = vunpack.c.0.s8 %v937
    %v939 = vperm.slane %v931, %v938
    %v940 = vrot.slane %v927, 4
    %v941 = vsel %vm208, %v940, %v921
    %v942 = vrot.slane %v921, 4
    %v943 = vsel %vm208, %v927, %v942
    %v945 = vunpack.c.l.s4 1934713408
    %v946 = vunpack.c.0.s8 %v945
    %v947 = vperm.slane %v941, %v946
    %v949 = vunpack.c.l.s4 1934713408
    %v950 = vunpack.c.0.s8 %v949
    %v951 = vperm.slane %v943, %v950
    %v952 = vrot.slane %v947, 4
    %v953 = vsel %vm208, %v952, %v935
    %v954 = vrot.slane %v935, 4
    %v955 = vsel %vm208, %v947, %v954
    %v956 = vrot.slane %v951, 4
    %v957 = vsel %vm208, %v956, %v939
    %v958 = vrot.slane %v939, 4
    %v959 = vsel %vm208, %v951, %v958
    %v960 = vpack.c.bf16 %v899, %v899
    %v961 = vpack.c.bf16 %v953, %v953
    %v962 = vpack.c.bf16 %v901, %v901
    %v963 = vpack.c.bf16 %v955, %v955
    %v964 = vpack.c.bf16 %v903, %v903
    %v965 = vpack.c.bf16 %v957, %v957
    %v966 = vpack.c.bf16 %v905, %v905
    %v967 = vpack.c.bf16 %v959, %v959
    %v968 = vld [vmem:[%s3] sm:$0xff]
    %v969 = vld [vmem:[%s3 + $0x8] sm:$0xff]
    %v972 = vunpack.c.l.b16 %v428
    %v973 = vunpack.c.l.b16 %v429
    %v974 = vpack.c.b16 %v973, %v972
    %v977 = vunpack.c.l.b16 %v694
    %v978 = vunpack.c.l.b16 %v695
    %v979 = vpack.c.b16 %v978, %v977
    %vm980 = vcmask 64512
    %v982 = vsel %vm980, %v974, 0
    %v985 = vsel %vm980, %v979, 0
    %987 = vmatpush.bf16.xpose.msra.mxu0 0
    %988 = vmatpush.bf16.xpose.msra.mxu0 0
    %989 = vmatpush.bf16.xpose.msra.mxu0 0
    %990 = vmatpush.bf16.xpose.msra.mxu0 0
    %991 = vmatpush.bf16.xpose.msra.mxu0 0
    %992 = vmatpush.bf16.xpose.msra.mxu0 0
    %993 = vmatpush.bf16.xpose.msra.mxu0 0
    %994 = vmatpush.bf16.xpose.msra.mxu0 %v985
    %995 = vmatmul.bf16.gmra.mxu0 %v982
    %v996 = vpop.f32.mrf.mxu0
    %v997 = vadd.f32 %v968, %v996
    %v998 = vpop.f32.mrf.mxu0
    %v999 = vadd.f32 %v969, %v998
    %1000 = vdwg.mxu0
    %v1003 = vunpack.c.l.b16 %v430
    %v1004 = vunpack.c.l.b16 %v431
    %v1005 = vpack.c.b16 %v1004, %v1003
    %v1008 = vunpack.c.l.b16 %v696
    %v1009 = vunpack.c.l.b16 %v697
    %v1010 = vpack.c.b16 %v1009, %v1008
    %v1012 = vsel %vm980, %v1005, 0
    %v1015 = vsel %vm980, %v1010, 0
    %1017 = vmatpush.bf16.xpose.msra.mxu0 0
    %1018 = vmatpush.bf16.xpose.msra.mxu0 0
    %1019 = vmatpush.bf16.xpose.msra.mxu0 0
    %1020 = vmatpush.bf16.xpose.msra.mxu0 0
    %1021 = vmatpush.bf16.xpose.msra.mxu0 0
    %1022 = vmatpush.bf16.xpose.msra.mxu0 0
    %1023 = vmatpush.bf16.xpose.msra.mxu0 0
    %1024 = vmatpush.bf16.xpose.msra.mxu0 %v1015
    %1025 = vmatmul.bf16.gmra.mxu0 %v1012
    %v1026 = vpop.f32.mrf.mxu0
    %v1027 = vadd.f32 %v968, %v1026
    %v1028 = vpop.f32.mrf.mxu0
    %v1029 = vadd.f32 %v969, %v1028
    %1030 = vdwg.mxu0
    %v1033 = vunpack.c.l.b16 %v432
    %v1034 = vunpack.c.l.b16 %v433
    %v1035 = vpack.c.b16 %v1034, %v1033
    %v1038 = vunpack.c.l.b16 %v698
    %v1039 = vunpack.c.l.b16 %v699
    %v1040 = vpack.c.b16 %v1039, %v1038
    %v1042 = vsel %vm980, %v1035, 0
    %v1045 = vsel %vm980, %v1040, 0
    %1047 = vmatpush.bf16.xpose.msra.mxu0 0
    %1048 = vmatpush.bf16.xpose.msra.mxu0 0
    %1049 = vmatpush.bf16.xpose.msra.mxu0 0
    %1050 = vmatpush.bf16.xpose.msra.mxu0 0
    %1051 = vmatpush.bf16.xpose.msra.mxu0 0
    %1052 = vmatpush.bf16.xpose.msra.mxu0 0
    %1053 = vmatpush.bf16.xpose.msra.mxu0 0
    %1054 = vmatpush.bf16.xpose.msra.mxu0 %v1045
    %1055 = vmatmul.bf16.gmra.mxu0 %v1042
    %v1056 = vpop.f32.mrf.mxu0
    %v1057 = vadd.f32 %v968, %v1056
    %v1058 = vpop.f32.mrf.mxu0
    %v1059 = vadd.f32 %v969, %v1058
    %1060 = vdwg.mxu0
    %v1063 = vunpack.c.l.b16 %v434
    %v1064 = vunpack.c.l.b16 %v435
    %v1065 = vpack.c.b16 %v1064, %v1063
    %v1068 = vunpack.c.l.b16 %v700
    %v1069 = vunpack.c.l.b16 %v701
    %v1070 = vpack.c.b16 %v1069, %v1068
    %v1072 = vsel %vm980, %v1065, 0
    %v1075 = vsel %vm980, %v1070, 0
    %1077 = vmatpush.bf16.xpose.msra.mxu0 0
    %1078 = vmatpush.bf16.xpose.msra.mxu0 0
    %1079 = vmatpush.bf16.xpose.msra.mxu0 0
    %1080 = vmatpush.bf16.xpose.msra.mxu0 0
    %1081 = vmatpush.bf16.xpose.msra.mxu0 0
    %1082 = vmatpush.bf16.xpose.msra.mxu0 0
    %1083 = vmatpush.bf16.xpose.msra.mxu0 0
    %1084 = vmatpush.bf16.xpose.msra.mxu0 %v1075
    %1085 = vmatmul.bf16.gmra.mxu0 %v1072
    %v1086 = vpop.f32.mrf.mxu0
    %v1087 = vadd.f32 %v968, %v1086
    %v1088 = vpop.f32.mrf.mxu0
    %v1089 = vadd.f32 %v969, %v1088
    %1090 = vdwg.mxu0
    %vm1091 = vcmask 130048
    %v1092 = vsel %vm1091, %v997, -inf
    %1093 = vmax.xlane.f32.xlu0 %v1092
    %v1094 = vpop.xlane.xlu0 %1093
    %v1095 = vsel %vm1091, %v999, -inf
    %1096 = vmax.xlane.f32.xlu0 %v1095
    %v1097 = vpop.xlane.xlu0 %1096
    %v1098 = vsel %vm1091, %v1027, -inf
    %1099 = vmax.xlane.f32.xlu0 %v1098
    %v1100 = vpop.xlane.xlu0 %1099
    %v1101 = vsel %vm1091, %v1029, -inf
    %1102 = vmax.xlane.f32.xlu0 %v1101
    %v1103 = vpop.xlane.xlu0 %1102
    %v1104 = vsel %vm1091, %v1057, -inf
    %1105 = vmax.xlane.f32.xlu0 %v1104
    %v1106 = vpop.xlane.xlu0 %1105
    %v1107 = vsel %vm1091, %v1059, -inf
    %1108 = vmax.xlane.f32.xlu0 %v1107
    %v1109 = vpop.xlane.xlu0 %1108
    %v1110 = vsel %vm1091, %v1087, -inf
    %1111 = vmax.xlane.f32.xlu0 %v1110
    %v1112 = vpop.xlane.xlu0 %1111
    %v1113 = vsel %vm1091, %v1089, -inf
    %1114 = vmax.xlane.f32.xlu0 %v1113
    %v1115 = vpop.xlane.xlu0 %1114
    %v1116 = vsub.f32 %v997, %v1094
    %v1117 = vsub.f32 %v999, %v1097
    %v1118 = vsub.f32 %v1027, %v1100
    %v1119 = vsub.f32 %v1029, %v1103
    %v1120 = vsub.f32 %v1057, %v1106
    %v1121 = vsub.f32 %v1059, %v1109
    %v1122 = vsub.f32 %v1087, %v1112
    %v1123 = vsub.f32 %v1089, %v1115
    %v1124 = vmul.f32 %v1116, 1.442695
    %v1125 = vpow.pop %v1124
    %v1126 = vmul.f32 %v1117, 1.442695
    %v1127 = vpow.pop %v1126
    %v1128 = vmul.f32 %v1118, 1.442695
    %v1129 = vpow.pop %v1128
    %v1130 = vmul.f32 %v1119, 1.442695
    %v1131 = vpow.pop %v1130
    %v1132 = vmul.f32 %v1120, 1.442695
    %v1133 = vpow.pop %v1132
    %v1134 = vmul.f32 %v1121, 1.442695
    %v1135 = vpow.pop %v1134
    %v1136 = vmul.f32 %v1122, 1.442695
    %v1137 = vpow.pop %v1136
    %v1138 = vmul.f32 %v1123, 1.442695
    %v1139 = vpow.pop %v1138
    %v1140 = vsel %vm1091, %v1125, 0.0
    %1141 = vadd.xlane.f32.xlu0 %v1140
    %v1142 = vpop.xlane.xlu0 %1141
    %v1143 = vsel %vm1091, %v1127, 0.0
    %1144 = vadd.xlane.f32.xlu0 %v1143
    %v1145 = vpop.xlane.xlu0 %1144
    %v1146 = vsel %vm1091, %v1129, 0.0
    %1147 = vadd.xlane.f32.xlu0 %v1146
    %v1148 = vpop.xlane.xlu0 %1147
    %v1149 = vsel %vm1091, %v1131, 0.0
    %1150 = vadd.xlane.f32.xlu0 %v1149
    %v1151 = vpop.xlane.xlu0 %1150
    %v1152 = vsel %vm1091, %v1133, 0.0
    %1153 = vadd.xlane.f32.xlu0 %v1152
    %v1154 = vpop.xlane.xlu0 %1153
    %v1155 = vsel %vm1091, %v1135, 0.0
    %1156 = vadd.xlane.f32.xlu0 %v1155
    %v1157 = vpop.xlane.xlu0 %1156
    %v1158 = vsel %vm1091, %v1137, 0.0
    %1159 = vadd.xlane.f32.xlu0 %v1158
    %v1160 = vpop.xlane.xlu0 %1159
    %v1161 = vsel %vm1091, %v1139, 0.0
    %1162 = vadd.xlane.f32.xlu0 %v1161
    %v1163 = vpop.xlane.xlu0 %1162
    %v1164 = vrcp.pop %v1142
    %v1165 = vrcp.pop %v1145
    %v1166 = vrcp.pop %v1148
    %v1167 = vrcp.pop %v1151
    %v1168 = vrcp.pop %v1154
    %v1169 = vrcp.pop %v1157
    %v1170 = vrcp.pop %v1160
    %v1171 = vrcp.pop %v1163
    %v1172 = vmul.f32 %v1125, %v1164
    %v1173 = vmul.f32 %v1127, %v1165
    %v1174 = vmul.f32 %v1129, %v1166
    %v1175 = vmul.f32 %v1131, %v1167
    %v1176 = vmul.f32 %v1133, %v1168
    %v1177 = vmul.f32 %v1135, %v1169
    %v1178 = vmul.f32 %v1137, %v1170
    %v1179 = vmul.f32 %v1139, %v1171
    %v1180 = vpack.c.bf16 %v1172, %v1172
    %v1181 = vpack.c.bf16 %v1173, %v1173
    %v1182 = vpack.c.bf16 %v1174, %v1174
    %v1183 = vpack.c.bf16 %v1175, %v1175
    %v1184 = vpack.c.bf16 %v1176, %v1176
    %v1185 = vpack.c.bf16 %v1177, %v1177
    %v1186 = vpack.c.bf16 %v1178, %v1178
    %v1187 = vpack.c.bf16 %v1179, %v1179
    %v1190 = vunpack.c.l.b16 %v1180
    %v1191 = vunpack.c.l.b16 %v1181
    %v1192 = vpack.c.b16 %v1191, %v1190
    %v1195 = vunpack.c.l.b16 %v960
    %v1196 = vunpack.c.l.b16 %v961
    %v1197 = vpack.c.b16 %v1196, %v1195
    %v1200 = vsel %vm1091, %v1192, 0
    %1202 = vmatpush.bf16.msra.mxu0 0
    %1203 = vmatpush.bf16.msra.mxu0 0
    %1204 = vmatpush.bf16.msra.mxu0 0
    %1205 = vmatpush.bf16.msra.mxu0 0
    %1206 = vmatpush.bf16.msra.mxu0 0
    %1207 = vmatpush.bf16.msra.mxu0 0
    %1208 = vmatpush.bf16.msra.mxu0 0
    %1209 = vmatpush.bf16.msra.mxu0 %v1197
    %1210 = vmatmul.bf16.gmra.mxu0 %v1200
    %v1211 = vpop.f32.mrf.mxu0
    %v1212 = vadd.f32 0.0, %v1211
    %v1213 = vpop.f32.mrf.mxu0
    %v1214 = vadd.f32 0.0, %v1213
    %1215 = vdwg.mxu0
    %v1218 = vunpack.c.l.b16 %v1182
    %v1219 = vunpack.c.l.b16 %v1183
    %v1220 = vpack.c.b16 %v1219, %v1218
    %v1223 = vunpack.c.l.b16 %v962
    %v1224 = vunpack.c.l.b16 %v963
    %v1225 = vpack.c.b16 %v1224, %v1223
    %v1228 = vsel %vm1091, %v1220, 0
    %1230 = vmatpush.bf16.msra.mxu0 0
    %1231 = vmatpush.bf16.msra.mxu0 0
    %1232 = vmatpush.bf16.msra.mxu0 0
    %1233 = vmatpush.bf16.msra.mxu0 0
    %1234 = vmatpush.bf16.msra.mxu0 0
    %1235 = vmatpush.bf16.msra.mxu0 0
    %1236 = vmatpush.bf16.msra.mxu0 0
    %1237 = vmatpush.bf16.msra.mxu0 %v1225
    %1238 = vmatmul.bf16.gmra.mxu0 %v1228
    %v1239 = vpop.f32.mrf.mxu0
    %v1240 = vadd.f32 0.0, %v1239
    %v1241 = vpop.f32.mrf.mxu0
    %v1242 = vadd.f32 0.0, %v1241
    %1243 = vdwg.mxu0
    %v1246 = vunpack.c.l.b16 %v1184
    %v1247 = vunpack.c.l.b16 %v1185
    %v1248 = vpack.c.b16 %v1247, %v1246
    %v1251 = vunpack.c.l.b16 %v964
    %v1252 = vunpack.c.l.b16 %v965
    %v1253 = vpack.c.b16 %v1252, %v1251
    %v1256 = vsel %vm1091, %v1248, 0
    %1258 = vmatpush.bf16.msra.mxu0 0
    %1259 = vmatpush.bf16.msra.mxu0 0
    %1260 = vmatpush.bf16.msra.mxu0 0
    %1261 = vmatpush.bf16.msra.mxu0 0
    %1262 = vmatpush.bf16.msra.mxu0 0
    %1263 = vmatpush.bf16.msra.mxu0 0
    %1264 = vmatpush.bf16.msra.mxu0 0
    %1265 = vmatpush.bf16.msra.mxu0 %v1253
    %1266 = vmatmul.bf16.gmra.mxu0 %v1256
    %v1267 = vpop.f32.mrf.mxu0
    %v1268 = vadd.f32 0.0, %v1267
    %v1269 = vpop.f32.mrf.mxu0
    %v1270 = vadd.f32 0.0, %v1269
    %1271 = vdwg.mxu0
    %v1274 = vunpack.c.l.b16 %v1186
    %v1275 = vunpack.c.l.b16 %v1187
    %v1276 = vpack.c.b16 %v1275, %v1274
    %v1279 = vunpack.c.l.b16 %v966
    %v1280 = vunpack.c.l.b16 %v967
    %v1281 = vpack.c.b16 %v1280, %v1279
    %v1284 = vsel %vm1091, %v1276, 0
    %1286 = vmatpush.bf16.msra.mxu0 0
    %1287 = vmatpush.bf16.msra.mxu0 0
    %1288 = vmatpush.bf16.msra.mxu0 0
    %1289 = vmatpush.bf16.msra.mxu0 0
    %1290 = vmatpush.bf16.msra.mxu0 0
    %1291 = vmatpush.bf16.msra.mxu0 0
    %1292 = vmatpush.bf16.msra.mxu0 0
    %1293 = vmatpush.bf16.msra.mxu0 %v1281
    %1294 = vmatmul.bf16.gmra.mxu0 %v1284
    %v1295 = vpop.f32.mrf.mxu0
    %v1296 = vadd.f32 0.0, %v1295
    %v1297 = vpop.f32.mrf.mxu0
    %v1298 = vadd.f32 0.0, %v1297
    %1299 = vdwg.mxu0
    %v1300 = vrot.slane %v1268, 4
    %v1301 = vsel %vm208, %v1300, %v1212
    %v1302 = vrot.slane %v1212, 4
    %v1303 = vsel %vm208, %v1268, %v1302
    %v1305 = vunpack.c.l.s4 1983009808
    %v1306 = vunpack.c.0.s8 %v1305
    %v1307 = vperm.slane %v1301, %v1306
    %v1309 = vunpack.c.l.s4 1983009808
    %v1310 = vunpack.c.0.s8 %v1309
    %v1311 = vperm.slane %v1303, %v1310
    %v1312 = vrot.slane %v1296, 4
    %v1313 = vsel %vm208, %v1312, %v1240
    %v1314 = vrot.slane %v1240, 4
    %v1315 = vsel %vm208, %v1296, %v1314
    %v1317 = vunpack.c.l.s4 1983009808
    %v1318 = vunpack.c.0.s8 %v1317
    %v1319 = vperm.slane %v1313, %v1318
    %v1321 = vunpack.c.l.s4 1983009808
    %v1322 = vunpack.c.0.s8 %v1321
    %v1323 = vperm.slane %v1315, %v1322
    %v1324 = vrot.slane %v1319, 4
    %v1325 = vsel %vm208, %v1324, %v1307
    %v1326 = vrot.slane %v1307, 4
    %v1327 = vsel %vm208, %v1319, %v1326
    %v1329 = vunpack.c.l.s4 1934713408
    %v1330 = vunpack.c.0.s8 %v1329
    %v1331 = vperm.slane %v1325, %v1330
    %v1333 = vunpack.c.l.s4 1934713408
    %v1334 = vunpack.c.0.s8 %v1333
    %v1335 = vperm.slane %v1327, %v1334
    %v1336 = vrot.slane %v1323, 4
    %v1337 = vsel %vm208, %v1336, %v1311
    %v1338 = vrot.slane %v1311, 4
    %v1339 = vsel %vm208, %v1323, %v1338
    %v1341 = vunpack.c.l.s4 1934713408
    %v1342 = vunpack.c.0.s8 %v1341
    %v1343 = vperm.slane %v1337, %v1342
    %v1345 = vunpack.c.l.s4 1934713408
    %v1346 = vunpack.c.0.s8 %v1345
    %v1347 = vperm.slane %v1339, %v1346
    %v1348 = vrot.slane %v1331, 4
    %v1349 = vsel %vm208, 0.0, %v1348
    %v1350 = vrot.slane %v1335, 4
    %v1351 = vsel %vm208, 0.0, %v1350
    %v1352 = vrot.slane %v1343, 4
    %v1353 = vsel %vm208, 0.0, %v1352
    %v1354 = vrot.slane %v1347, 4
    %v1355 = vsel %vm208, 0.0, %v1354
    %v1356 = vrot.slane %v1270, 4
    %v1357 = vsel %vm208, %v1356, %v1214
    %v1358 = vrot.slane %v1214, 4
    %v1359 = vsel %vm208, %v1270, %v1358
    %v1361 = vunpack.c.l.s4 1983009808
    %v1362 = vunpack.c.0.s8 %v1361
    %v1363 = vperm.slane %v1357, %v1362
    %v1365 = vunpack.c.l.s4 1983009808
    %v1366 = vunpack.c.0.s8 %v1365
    %v1367 = vperm.slane %v1359, %v1366
    %v1368 = vrot.slane %v1298, 4
    %v1369 = vsel %vm208, %v1368, %v1242
    %v1370 = vrot.slane %v1242, 4
    %v1371 = vsel %vm208, %v1298, %v1370
    %v1373 = vunpack.c.l.s4 1983009808
    %v1374 = vunpack.c.0.s8 %v1373
    %v1375 = vperm.slane %v1369, %v1374
    %v1377 = vunpack.c.l.s4 1983009808
    %v1378 = vunpack.c.0.s8 %v1377
    %v1379 = vperm.slane %v1371, %v1378
    %v1380 = vrot.slane %v1375, 4
    %v1381 = vsel %vm208, %v1380, %v1363
    %v1382 = vrot.slane %v1363, 4
    %v1383 = vsel %vm208, %v1375, %v1382
    %v1385 = vunpack.c.l.s4 1934713408
    %v1386 = vunpack.c.0.s8 %v1385
    %v1387 = vperm.slane %v1381, %v1386
    %v1389 = vunpack.c.l.s4 1934713408
    %v1390 = vunpack.c.0.s8 %v1389
    %v1391 = vperm.slane %v1383, %v1390
    %v1392 = vrot.slane %v1379, 4
    %v1393 = vsel %vm208, %v1392, %v1367
    %v1394 = vrot.slane %v1367, 4
    %v1395 = vsel %vm208, %v1379, %v1394
    %v1397 = vunpack.c.l.s4 1934713408
    %v1398 = vunpack.c.0.s8 %v1397
    %v1399 = vperm.slane %v1393, %v1398
    %v1401 = vunpack.c.l.s4 1934713408
    %v1402 = vunpack.c.0.s8 %v1401
    %v1403 = vperm.slane %v1395, %v1402
    %v1404 = vrot.slane %v1387, 4
    %v1405 = vsel %vm208, 0.0, %v1404
    %v1406 = vrot.slane %v1391, 4
    %v1407 = vsel %vm208, 0.0, %v1406
    %v1408 = vrot.slane %v1399, 4
    %v1409 = vsel %vm208, 0.0, %v1408
    %v1410 = vrot.slane %v1403, 4
    %v1411 = vsel %vm208, 0.0, %v1410
    %v1412 = vsel %vm208, %v1350, %v1331
    %v1414 = vunpack.c.l.s4 1983009808
    %v1415 = vunpack.c.0.s8 %v1414
    %v1416 = vperm.slane %v1412, %v1415
    %v1417 = vrot.slane %v1351, 4
    %v1418 = vsel %vm208, %v1417, %v1349
    %v1420 = vunpack.c.l.s4 1983009808
    %v1421 = vunpack.c.0.s8 %v1420
    %v1422 = vperm.slane %v1418, %v1421
    %v1423 = vsel %vm208, %v1354, %v1343
    %v1425 = vunpack.c.l.s4 1983009808
    %v1426 = vunpack.c.0.s8 %v1425
    %v1427 = vperm.slane %v1423, %v1426
    %v1428 = vrot.slane %v1355, 4
    %v1429 = vsel %vm208, %v1428, %v1353
    %v1431 = vunpack.c.l.s4 1983009808
    %v1432 = vunpack.c.0.s8 %v1431
    %v1433 = vperm.slane %v1429, %v1432
    %v1434 = vrot.slane %v1422, 4
    %v1435 = vsel %vm208, %v1434, %v1416
    %v1436 = vrot.slane %v1416, 4
    %v1437 = vsel %vm208, %v1422, %v1436
    %v1439 = vunpack.c.l.s4 1934713408
    %v1440 = vunpack.c.0.s8 %v1439
    %v1441 = vperm.slane %v1435, %v1440
    %v1443 = vunpack.c.l.s4 1934713408
    %v1444 = vunpack.c.0.s8 %v1443
    %v1445 = vperm.slane %v1437, %v1444
    %v1446 = vrot.slane %v1433, 4
    %v1447 = vsel %vm208, %v1446, %v1427
    %v1448 = vrot.slane %v1427, 4
    %v1449 = vsel %vm208, %v1433, %v1448
    %v1451 = vunpack.c.l.s4 1934713408
    %v1452 = vunpack.c.0.s8 %v1451
    %v1453 = vperm.slane %v1447, %v1452
    %v1455 = vunpack.c.l.s4 1934713408
    %v1456 = vunpack.c.0.s8 %v1455
    %v1457 = vperm.slane %v1449, %v1456
    %v1458 = vrot.slane %v1453, 4
    %v1459 = vsel %vm208, %v1458, %v1441
    %v1460 = vrot.slane %v1441, 4
    %v1461 = vsel %vm208, %v1453, %v1460
    %v1462 = vrot.slane %v1457, 4
    %v1463 = vsel %vm208, %v1462, %v1445
    %v1464 = vrot.slane %v1445, 4
    %v1465 = vsel %vm208, %v1457, %v1464
    %v1466 = vsel %vm208, %v1406, %v1387
    %v1468 = vunpack.c.l.s4 1983009808
    %v1469 = vunpack.c.0.s8 %v1468
    %v1470 = vperm.slane %v1466, %v1469
    %v1471 = vrot.slane %v1407, 4
    %v1472 = vsel %vm208, %v1471, %v1405
    %v1474 = vunpack.c.l.s4 1983009808
    %v1475 = vunpack.c.0.s8 %v1474
    %v1476 = vperm.slane %v1472, %v1475
    %v1477 = vsel %vm208, %v1410, %v1399
    %v1479 = vunpack.c.l.s4 1983009808
    %v1480 = vunpack.c.0.s8 %v1479
    %v1481 = vperm.slane %v1477, %v1480
    %v1482 = vrot.slane %v1411, 4
    %v1483 = vsel %vm208, %v1482, %v1409
    %v1485 = vunpack.c.l.s4 1983009808
    %v1486 = vunpack.c.0.s8 %v1485
    %v1487 = vperm.slane %v1483, %v1486
    %v1488 = vrot.slane %v1476, 4
    %v1489 = vsel %vm208, %v1488, %v1470
    %v1490 = vrot.slane %v1470, 4
    %v1491 = vsel %vm208, %v1476, %v1490
    %v1493 = vunpack.c.l.s4 1934713408
    %v1494 = vunpack.c.0.s8 %v1493
    %v1495 = vperm.slane %v1489, %v1494
    %v1497 = vunpack.c.l.s4 1934713408
    %v1498 = vunpack.c.0.s8 %v1497
    %v1499 = vperm.slane %v1491, %v1498
    %v1500 = vrot.slane %v1487, 4
    %v1501 = vsel %vm208, %v1500, %v1481
    %v1502 = vrot.slane %v1481, 4
    %v1503 = vsel %vm208, %v1487, %v1502
    %v1505 = vunpack.c.l.s4 1934713408
    %v1506 = vunpack.c.0.s8 %v1505
    %v1507 = vperm.slane %v1501, %v1506
    %v1509 = vunpack.c.l.s4 1934713408
    %v1510 = vunpack.c.0.s8 %v1509
    %v1511 = vperm.slane %v1503, %v1510
    %v1512 = vrot.slane %v1507, 4
    %v1513 = vsel %vm208, %v1512, %v1495
    %v1514 = vrot.slane %v1495, 4
    %v1515 = vsel %vm208, %v1507, %v1514
    %v1516 = vrot.slane %v1511, 4
    %v1517 = vsel %vm208, %v1516, %v1499
    %v1518 = vrot.slane %v1499, 4
    %v1519 = vsel %vm208, %v1511, %v1518
    %1522 = vrot.lane.b32.xlu0 %v1461, 8
    %v1523 = vpop.permute.xlu0 %1522
    %1524 = vrot.lane.b32.xlu0 %v1515, 8
    %v1525 = vpop.permute.xlu0 %1524
    %1530 = vrot.lane.b32.xlu0 %v1463, 16
    %v1531 = vpop.permute.xlu0 %1530
    %1532 = vrot.lane.b32.xlu0 %v1517, 16
    %v1533 = vpop.permute.xlu0 %1532
    %1538 = vrot.lane.b32.xlu0 %v1465, 24
    %v1539 = vpop.permute.xlu0 %1538
    %1540 = vrot.lane.b32.xlu0 %v1519, 24
    %v1541 = vpop.permute.xlu0 %1540
    %v1544 = vsel %vm980, %v1459, %v1523
    %v1545 = vsel %vm980, %v1513, %v1525
    %v1546 = vsel %vm1091, %v1544, %v1531
    %v1547 = vsel %vm1091, %v1545, %v1533
    %vm1548 = vcmask 195584
    %v1549 = vsel %vm1548, %v1546, %v1539
    %v1550 = vsel %vm1548, %v1547, %v1541
    %v1551 = vpack.c.bf16 %v1550, %v1549
    %v1552 = vld [vmem:[%s6] sm:$0xf]
    %v1553 = vld [vmem:[%s6 + $0x4] sm:$0xf]
    %v1554 = vld [vmem:[%s6 + $0x8] sm:$0xf]
    %v1555 = vld [vmem:[%s6 + $0xc] sm:$0xf]
    %v1560 = vunpack.c.l.b16 %v1552
    %v1561 = vunpack.c.l.b16 %v1553
    %v1562 = vunpack.c.l.b16 %v1554
    %v1563 = vunpack.c.l.b16 %v1555
    %v1564 = vpack.c.b16 %v1561, %v1560
    %v1565 = vpack.c.b16 %v1563, %v1562
    %v1569 = vsel %vm43, %v1551, 0
    %1571 = vmatpush.bf16.msra.mxu0 0
    %1572 = vmatpush.bf16.msra.mxu0 0
    %1573 = vmatpush.bf16.msra.mxu0 0
    %1574 = vmatpush.bf16.msra.mxu0 0
    %1575 = vmatpush.bf16.msra.mxu0 0
    %1576 = vmatpush.bf16.msra.mxu0 0
    %1577 = vmatpush.bf16.msra.mxu0 %v1565
    %1578 = vmatpush.bf16.msra.mxu0 %v1564
    %1579 = vmatmul.bf16.gmra.mxu0 %v1569
    %v1580 = vpop.f32.mrf.mxu0
    %v1581 = vadd.f32 0.0, %v1580
    %v1582 = vpop.f32.mrf.mxu0
    %v1583 = vadd.f32 0.0, %v1582
    %1584 = vdwg.mxu0
    %v1585 = vadd.f32 %v39, %v1581
    %v1586 = vadd.f32 %v40, %v1583
    %v1587 = vmul.f32 %v1585, %v1585
    %v1588 = vmul.f32 %v1586, %v1586
    %v1589 = vsel %vm43, %v1587, 0.0
    %1590 = vadd.xlane.f32.xlu0 %v1589
    %v1591 = vpop.xlane.xlu0 %1590
    %v1592 = vsel %vm43, %v1588, 0.0
    %1593 = vadd.xlane.f32.xlu0 %v1592
    %v1594 = vpop.xlane.xlu0 %1593
    %v1595 = vmul.f32 %v1591, %v56
    %v1596 = vmul.f32 %v1594, %v56
    %v1597 = vadd.f32 %v1595, 1e-06
    %v1598 = vadd.f32 %v1596, 1e-06
    %v1599 = vrsqrt.pop %v1597
    %v1600 = vmul.f32 %v1599, %v1597
    %v1601 = vmul.f32 %v1600, %v1599
    %v1602 = vmul.f32 0.5, %v1601
    %v1603 = vsub.f32 1.5, %v1602
    %v1604 = vmul.f32 %v1599, %v1603
    %vm1605 = vweird.f32 %v1597
    %vm1606 = vweird.f32 %v1599
    %vm1607 = vmor %vm1605, %vm1606
    %v1608 = vsel %vm1607, %v1599, %v1604
    %v1609 = vrsqrt.pop %v1598
    %v1610 = vmul.f32 %v1609, %v1598
    %v1611 = vmul.f32 %v1610, %v1609
    %v1612 = vmul.f32 0.5, %v1611
    %v1613 = vsub.f32 1.5, %v1612
    %v1614 = vmul.f32 %v1609, %v1613
    %vm1615 = vweird.f32 %v1598
    %vm1616 = vweird.f32 %v1609
    %vm1617 = vmor %vm1615, %vm1616
    %v1618 = vsel %vm1617, %v1609, %v1614
    %v1619 = vmul.f32 %v1585, %v1608
    %v1620 = vmul.f32 %v1586, %v1618
    %v1621 = vld [vmem:[%s7] sm:$0x3]
    %v1622 = vperm.slane %v1621, 0
    %v1623 = vmul.f32 %v1619, %v1622
    %v1624 = vmul.f32 %v1620, %v1622
    %v1625 = vsel %vm43, %v1623, 0.0
    %1626 = vadd.xlane.f32.xlu0 %v1625
    %v1627 = vpop.xlane.xlu0 %1626
    %v1628 = vsel %vm43, %v1624, 0.0
    %1629 = vadd.xlane.f32.xlu0 %v1628
    %v1630 = vpop.xlane.xlu0 %1629
    %v1631 = vperm.slane %v1621, 1
    %v1632 = vmul.f32 %v1619, %v1631
    %v1633 = vmul.f32 %v1620, %v1631
    %v1634 = vsel %vm43, %v1632, 0.0
    %1635 = vadd.xlane.f32.xlu0 %v1634
    %v1636 = vpop.xlane.xlu0 %1635
    %v1637 = vsel %vm43, %v1633, 0.0
    %1638 = vadd.xlane.f32.xlu0 %v1637
    %v1639 = vpop.xlane.xlu0 %1638
    %vm1640 = vcmask 7168
    %v1641 = vsel %vm1640, %v1627, %v1636
    %v1642 = vsel %vm1640, %v1630, %v1639
    %vm1643 = vcmask 15360
    %v1644 = vsel %vm1643, %v1641, -inf
    %1645 = vmax.xlane.f32.xlu0 %v1644
    %v1646 = vpop.xlane.xlu0 %1645
    %v1647 = vsel %vm1643, %v1642, -inf
    %1648 = vmax.xlane.f32.xlu0 %v1647
    %v1649 = vpop.xlane.xlu0 %1648
    %v1650 = vsub.f32 %v1641, %v1646
    %v1651 = vsub.f32 %v1642, %v1649
    %v1652 = vmul.f32 %v1650, 1.442695
    %v1653 = vpow.pop %v1652
    %v1654 = vmul.f32 %v1651, 1.442695
    %v1655 = vpow.pop %v1654
    %v1656 = vsel %vm1643, %v1653, 0.0
    %1657 = vadd.xlane.f32.xlu0 %v1656
    %v1658 = vpop.xlane.xlu0 %1657
    %v1659 = vsel %vm1643, %v1655, 0.0
    %1660 = vadd.xlane.f32.xlu0 %v1659
    %v1661 = vpop.xlane.xlu0 %1660
    %v1662 = vrcp.pop %v1658
    %v1663 = vmul.f32 %v1658, %v1662
    %v1664 = vsub.f32 1.0, %v1663
    %v1665 = vmul.f32 %v1662, %v1664
    %v1666 = vadd.f32 %v1662, %v1665
    %vm1667 = vweird.f32 %v1658
    %vm1668 = vweird.f32 %v1662
    %vm1669 = vmor %vm1667, %vm1668
    %v1670 = vsel %vm1669, %v1662, %v1666
    %v1671 = vand.u32 2147483647, %v1658
    %vm1672 = vcmp.eq.f32.partialorder %v1671, 8.507059e+37
    %v1673 = vand.u32 %v1658, 2147483648
    %v1674 = vor.u32 1.1754944e-38, %v1673
    %v1675 = vsel %vm1672, %v1674, %v1670
    %v1676 = vmul.f32 %v1653, %v1675
    %v1677 = vrcp.pop %v1661
    %v1678 = vmul.f32 %v1661, %v1677
    %v1679 = vsub.f32 1.0, %v1678
    %v1680 = vmul.f32 %v1677, %v1679
    %v1681 = vadd.f32 %v1677, %v1680
    %vm1682 = vweird.f32 %v1661
    %vm1683 = vweird.f32 %v1677
    %vm1684 = vmor %vm1682, %vm1683
    %v1685 = vsel %vm1684, %v1677, %v1681
    %v1686 = vand.u32 2147483647, %v1661
    %vm1687 = vcmp.eq.f32.partialorder %v1686, 8.507059e+37
    %v1688 = vand.u32 %v1661, 2147483648
    %v1689 = vor.u32 1.1754944e-38, %v1688
    %v1690 = vsel %vm1687, %v1689, %v1685
    %v1691 = vmul.f32 %v1655, %v1690
    %v1692 = vpack.c.bf16 %v1620, %v1619
    %v1693 = vld [vmem:[%s8] sm:$0xff]
    %v1694 = vld [vmem:[%s8 + $0x8] sm:$0xff]
    %v1695 = vld [vmem:[%s8 + $0x10] sm:$0xff]
    %v1696 = vld [vmem:[%s8 + $0x18] sm:$0xff]
    %v1701 = vunpack.c.l.b16 %v1693
    %v1702 = vunpack.c.h.b16 %v1693
    %v1703 = vunpack.c.l.b16 %v1694
    %v1704 = vunpack.c.h.b16 %v1694
    %v1705 = vunpack.c.l.b16 %v1695
    %v1706 = vunpack.c.h.b16 %v1695
    %v1707 = vunpack.c.l.b16 %v1696
    %v1708 = vunpack.c.h.b16 %v1696
    %v1709 = vpack.c.b16 %v1703, %v1701
    %v1710 = vpack.c.b16 %v1704, %v1702
    %v1711 = vpack.c.b16 %v1707, %v1705
    %v1712 = vpack.c.b16 %v1708, %v1706
    %v1718 = vsel %vm43, %v1692, 0
    %1720 = vmatpush.bf16.msra.mxu0 0
    %1721 = vmatpush.bf16.msra.mxu0 0
    %1722 = vmatpush.bf16.msra.mxu0 0
    %1723 = vmatpush.bf16.msra.mxu0 0
    %1724 = vmatpush.bf16.msra.mxu0 0
    %1725 = vmatpush.bf16.msra.mxu0 0
    %1726 = vmatpush.bf16.msra.mxu0 %v1711
    %1727 = vmatpush.bf16.msra.mxu0 %v1709
    %1728 = vmatmul.bf16.gmra.mxu0 %v1718
    %v1729 = vpop.f32.mrf.mxu0
    %v1730 = vadd.f32 0.0, %v1729
    %v1731 = vpop.f32.mrf.mxu0
    %v1732 = vadd.f32 0.0, %v1731
    %1733 = vdwg.mxu0
    %1734 = vmatpush.bf16.msra.mxu0 0
    %1735 = vmatpush.bf16.msra.mxu0 0
    %1736 = vmatpush.bf16.msra.mxu0 0
    %1737 = vmatpush.bf16.msra.mxu0 0
    %1738 = vmatpush.bf16.msra.mxu0 0
    %1739 = vmatpush.bf16.msra.mxu0 0
    %1740 = vmatpush.bf16.msra.mxu0 %v1712
    %1741 = vmatpush.bf16.msra.mxu0 %v1710
    %1742 = vmatmul.bf16.gmra.mxu0 %v1718
    %v1743 = vpop.f32.mrf.mxu0
    %v1744 = vadd.f32 0.0, %v1743
    %v1745 = vpop.f32.mrf.mxu0
    %v1746 = vadd.f32 0.0, %v1745
    %1747 = vdwg.mxu0
    %v1748 = vxor.u32 %v1730, 2147483648
    %v1749 = vxor.u32 %v1732, 2147483648
    %v1750 = vmul.f32 %v1748, 1.442695
    %v1751 = vpow.pop %v1750
    %v1752 = vmul.f32 %v1749, 1.442695
    %v1753 = vpow.pop %v1752
    %v1754 = vadd.f32 %v1751, 1.0
    %v1755 = vadd.f32 %v1753, 1.0
    %v1756 = vrcp.pop %v1754
    %v1757 = vmul.f32 %v1754, %v1756
    %v1758 = vsub.f32 1.0, %v1757
    %v1759 = vmul.f32 %v1756, %v1758
    %v1760 = vadd.f32 %v1756, %v1759
    %vm1761 = vweird.f32 %v1754
    %vm1762 = vweird.f32 %v1756
    %vm1763 = vmor %vm1761, %vm1762
    %v1764 = vsel %vm1763, %v1756, %v1760
    %v1765 = vand.u32 2147483647, %v1754
    %vm1766 = vcmp.eq.f32.partialorder %v1765, 8.507059e+37
    %v1767 = vand.u32 %v1754, 2147483648
    %v1768 = vor.u32 1.1754944e-38, %v1767
    %v1769 = vsel %vm1766, %v1768, %v1764
    %v1770 = vmul.f32 1.0, %v1769
    %v1771 = vrcp.pop %v1755
    %v1772 = vmul.f32 %v1755, %v1771
    %v1773 = vsub.f32 1.0, %v1772
    %v1774 = vmul.f32 %v1771, %v1773
    %v1775 = vadd.f32 %v1771, %v1774
    %vm1776 = vweird.f32 %v1755
    %vm1777 = vweird.f32 %v1771
    %vm1778 = vmor %vm1776, %vm1777
    %v1779 = vsel %vm1778, %v1771, %v1775
    %v1780 = vand.u32 2147483647, %v1755
    %vm1781 = vcmp.eq.f32.partialorder %v1780, 8.507059e+37
    %v1782 = vand.u32 %v1755, 2147483648
    %v1783 = vor.u32 1.1754944e-38, %v1782
    %v1784 = vsel %vm1781, %v1783, %v1779
    %v1785 = vmul.f32 1.0, %v1784
    %v1786 = vmul.f32 %v1730, %v1770
    %v1787 = vmul.f32 %v1732, %v1785
    %v1788 = vmul.f32 %v1786, %v1744
    %v1789 = vmul.f32 %v1787, %v1746
    %v1790 = vld [vmem:[%s4] sm:$0x1]
    %1792 = vset.pattern.permute.xlu0 0
    %1793 = vperm.xlu0 %1792, %v1676
    %v1794 = vpop.permute.xlu0 %1793
    %1797 = vset.pattern.permute.xlu0 0
    %1798 = vperm.xlu0 %1797, %v1691
    %v1799 = vpop.permute.xlu0 %1798
    %v1802 = vperm.slane %v1790, 0
    %v1804 = vmul.f32 %v1794, %v1802
    %v1805 = vmul.f32 %v1799, %v1802
    %v1806 = vsub.f32 1.0, %v1790
    %1807 = vset.pattern.permute.xlu0 1
    %1808 = vperm.xlu0 %1807, %v1676
    %v1809 = vpop.permute.xlu0 %1808
    %1811 = vset.pattern.permute.xlu0 1
    %1812 = vperm.xlu0 %1811, %v1691
    %v1813 = vpop.permute.xlu0 %1812
    %v1816 = vperm.slane %v1806, 0
    %v1818 = vmul.f32 %v1809, %v1816
    %v1819 = vmul.f32 %v1813, %v1816
    %v1820 = vadd.f32 %v1804, %v1818
    %v1821 = vadd.f32 %v1805, %v1819
    %v1822 = vmul.f32 %v1788, %v1820
    %v1823 = vmul.f32 %v1789, %v1821
    %v1824 = vpack.c.bf16 %v1823, %v1822
    %v1825 = vld [vmem:[%s9] sm:$0xf]
    %v1826 = vld [vmem:[%s9 + $0x4] sm:$0xf]
    %v1827 = vld [vmem:[%s9 + $0x8] sm:$0xf]
    %v1828 = vld [vmem:[%s9 + $0xc] sm:$0xf]
    %v1829 = vld [vmem:[%s9 + $0x10] sm:$0xf]
    %v1830 = vld [vmem:[%s9 + $0x14] sm:$0xf]
    %v1831 = vld [vmem:[%s9 + $0x18] sm:$0xf]
    %v1832 = vld [vmem:[%s9 + $0x1c] sm:$0xf]
    %v1833 = vld [vmem:[%s9 + $0x20] sm:$0xf]
    %v1834 = vld [vmem:[%s9 + $0x24] sm:$0xf]
    %v1835 = vld [vmem:[%s9 + $0x28] sm:$0xf]
    %v1836 = vld [vmem:[%s9 + $0x2c] sm:$0xf]
    %v1837 = vld [vmem:[%s9 + $0x30] sm:$0xf]
    %v1838 = vld [vmem:[%s9 + $0x34] sm:$0xf]
    %v1839 = vld [vmem:[%s9 + $0x38] sm:$0xf]
    %v1840 = vld [vmem:[%s9 + $0x3c] sm:$0xf]
    %v1857 = vunpack.c.l.b16 %v1825
    %v1858 = vunpack.c.l.b16 %v1826
    %v1859 = vunpack.c.l.b16 %v1827
    %v1860 = vunpack.c.l.b16 %v1828
    %v1861 = vunpack.c.l.b16 %v1829
    %v1862 = vunpack.c.l.b16 %v1830
    %v1863 = vunpack.c.l.b16 %v1831
    %v1864 = vunpack.c.l.b16 %v1832
    %v1865 = vunpack.c.l.b16 %v1833
    %v1866 = vunpack.c.l.b16 %v1834
    %v1867 = vunpack.c.l.b16 %v1835
    %v1868 = vunpack.c.l.b16 %v1836
    %v1869 = vunpack.c.l.b16 %v1837
    %v1870 = vunpack.c.l.b16 %v1838
    %v1871 = vunpack.c.l.b16 %v1839
    %v1872 = vunpack.c.l.b16 %v1840
    %v1873 = vpack.c.b16 %v1858, %v1857
    %v1874 = vpack.c.b16 %v1860, %v1859
    %v1875 = vpack.c.b16 %v1862, %v1861
    %v1876 = vpack.c.b16 %v1864, %v1863
    %v1877 = vpack.c.b16 %v1866, %v1865
    %v1878 = vpack.c.b16 %v1868, %v1867
    %v1879 = vpack.c.b16 %v1870, %v1869
    %v1880 = vpack.c.b16 %v1872, %v1871
    %1889 = vmatpush.bf16.msra.mxu0 %v1880
    %1890 = vmatpush.bf16.msra.mxu0 %v1879
    %1891 = vmatpush.bf16.msra.mxu0 %v1878
    %1892 = vmatpush.bf16.msra.mxu0 %v1877
    %1893 = vmatpush.bf16.msra.mxu0 %v1876
    %1894 = vmatpush.bf16.msra.mxu0 %v1875
    %1895 = vmatpush.bf16.msra.mxu0 %v1874
    %1896 = vmatpush.bf16.msra.mxu0 %v1873
    %1897 = vmatmul.bf16.gmra.mxu0 %v1824
    %v1898 = vpop.f32.mrf.mxu0
    %v1899 = vadd.f32 0.0, %v1898
    %v1900 = vpop.f32.mrf.mxu0
    %v1901 = vadd.f32 0.0, %v1900
    %1902 = vdwg.mxu0
    %v1903 = vadd.f32 %v1585, %v1899
    %v1904 = vadd.f32 %v1586, %v1901
    %1905 = vst.msk [vmem:[#allocation2] sm:$0xff] %vm43, %v1903
    %1906 = vst.msk [vmem:[#allocation2 + $0x8] sm:$0xff] %vm43, %v1904
    %1907 = vst.msk [vmem:[%s11] sm:$0xff] %vm1643, %v1641
    %1908 = vst.msk [vmem:[%s11 + $0x8] sm:$0xff] %vm1643, %v1642
    // Predicated region
    $region42: #{aura_decoder_layer.1} parent=1 // pred_check
      _
    $region43: #{aura_decoder_layer.1} parent=1 // pred_check_branch
      %1910 = sbr.rel (0) target = $region45
    $region44: #{aura_decoder_layer.1} parent=1 // pred_region
      %1912 = vsyncadd [#allocation3], 0
      %s1913 = sshll.u32 [#allocation2], 4
      %s1914 = int_to_ptr.vmem [resolvable:$true] %s1913
      %s1915 = sshll.u32 %s10, 4
      %s1916 = int_to_ptr.hbm [resolvable:$true] %s1915
      %1921 = dma.vmem_to_hbm [thread:$0]  %s1914, 256, %s1916, [#allocation3], 128, 128, 8
    $region45: #{aura_decoder_layer.1} parent=1 // pred_fallthru
      _
    // Predicated region
    $region46: #{aura_decoder_layer.1} parent=1 // pred_check
      _
    $region47: #{aura_decoder_layer.1} parent=1 // pred_check_branch
      %1923 = sbr.rel (0) target = $region49
    $region48: #{aura_decoder_layer.1} parent=1 // pred_region
      _
    $region49: #{aura_decoder_layer.1} parent=1 // pred_fallthru
      _
    // Predicated region
    $region50: #{aura_decoder_layer.1} parent=1 // pred_check
      _
    $region51: #{aura_decoder_layer.1} parent=1 // pred_check_branch
      %1925 = sbr.rel (0) target = $region53
    $region52: #{aura_decoder_layer.1} parent=1 // pred_region
      %1927 = dma.done [#allocation3], 256
    $region53: #{aura_decoder_layer.1} parent=1 // pred_fallthru
      _
    // Predicated region
    $region54: #{aura_decoder_layer.1} parent=1 // pred_check
      _
    $region55: #{aura_decoder_layer.1} parent=1 // pred_check_branch
      %1929 = sbr.rel (0) target = $region57
    $region56: #{aura_decoder_layer.1} parent=1 // pred_region
      _
    $region57: #{aura_decoder_layer.1} parent=1 // pred_fallthru
      _
    %1930 = vsyncpa [#allocation3], 1

</llo_original>
